<compile_context>
chip_gen: v6e
topology: v6e:2x2x1
jax: 0.10.0
libtpu: 0.0.40
codegen_flags: <defaults>
</compile_context>

<pallas_src>
import functools

import jax
import jax.numpy as jnp
from jax.experimental import pallas as pl
from jax.experimental.pallas import tpu as pltpu


# --------------------------------------------------------------------------------------
# Helpers.
# --------------------------------------------------------------------------------------
def _vmem_limit_bytes():
    """Generation-aware scoped-VMEM limit with headroom (v5e/v6e ~100 MiB, v7x ~52 MiB)."""
    try:
        cap = int(pltpu.get_tpu_info().vmem_capacity_bytes)
    except Exception:  # query unavailable -> conservative default valid on every gen
        cap = 64 * 1024 * 1024
    return max(32 * 1024 * 1024, min(cap - 12 * 1024 * 1024, 100 * 1024 * 1024))


def _pick_row_tile(Ho, Wo, target_rows=2048):
    """Largest divisor TH of Ho with TH*Wo near target_rows, keeping >=2 tiles if possible."""
    max_th = max(1, min(Ho if Ho < 2 else Ho // 2, max(1, target_rows // max(Wo, 1))))
    th = 1
    for cand in range(1, Ho + 1):
        if Ho % cand == 0 and cand <= max_th:
            th = cand
    return th


# --------------------------------------------------------------------------------------
# Kernel 1: dilated conv (per-tap-group MXU matmuls, f32 VMEM accumulator) + BN partials.
# --------------------------------------------------------------------------------------
def conv_stats_kernel(xp_ref, w_ref, conv_ref, sum_ref, sq_ref, acc_ref,
                      *, TH, Wo, K, dilation, taps_per_group):
    """One (batch, row-tile) grid step.

    xp_ref:   (1, Hp, Wp, Cin) bf16  whole padded image (index constant over row tiles
                                     -> DMA'd once per batch index)
    w_ref:    (K*K*Cin, Cout)  bf16  im2col-ordered weight (constant index -> resident)
    conv_ref: (1, 1, TH*Wo, Cout) bf16  conv output tile (pre-BN)
    sum_ref:  (1, 1, 1, Cout) f32    per-tile sum over rows
    sq_ref:   (1, 1, 1, Cout) f32    per-tile sum of squares
    acc_ref:  (TH*Wo, Cout) f32      VMEM scratch accumulator
    """
    Cin = xp_ref.shape[-1]
    M_t = TH * Wo
    halo_h = TH + dilation * (K - 1)

    r = pl.program_id(1)
    row0 = pl.multiple_of(r * TH, TH)

    # Haloed row slab for this output tile (already bf16 in HBM -> no in-kernel cast).
    x = xp_ref[:, pl.ds(row0, halo_h), :, :]                    # (1, halo_h, Wp, Cin)

    # K*K taps, grouped so each MXU contraction is >=128 where Cin allows.  Each group's
    # matmul accumulates into the f32 VMEM scratch; no full im2col slab is materialized.
    tap_idx = [(kh, kw) for kh in range(K) for kw in range(K)]
    for gi, g0 in enumerate(range(0, K * K, taps_per_group)):
        group = tap_idx[g0:g0 + taps_per_group]
        cols = [x[:, kh * dilation:kh * dilation + TH,
                   kw * dilation:kw * dilation + Wo, :] for kh, kw in group]
        lhs = cols[0] if len(cols) == 1 else jnp.concatenate(cols, axis=-1)
        lhs = lhs.reshape(M_t, len(group) * Cin)                # bf16 (M_t, g*Cin)
        w_blk = w_ref[g0 * Cin:(g0 + len(group)) * Cin, :]      # bf16 (g*Cin, Cout)
        part = jnp.dot(lhs, w_blk, preferred_element_type=jnp.float32)
        if gi == 0:
            acc_ref[...] = part
        else:
            acc_ref[...] += part

    acc = acc_ref[...]                                          # (M_t, Cout) f32
    conv_ref[...] = acc.astype(conv_ref.dtype)[None, None]      # bf16 intermediate
    sum_ref[...] = jnp.sum(acc, axis=0).reshape(1, 1, 1, -1)
    sq_ref[...] = jnp.sum(acc * acc, axis=0).reshape(1, 1, 1, -1)


# --------------------------------------------------------------------------------------
# Kernel 2: fused BN apply (pre-folded per-channel scale/shift) + ReLU.
# --------------------------------------------------------------------------------------
def bn_relu_kernel(conv_ref, scale_ref, shift_ref, o_ref):
    """conv_ref: (1,1,M_t,Cout) bf16; scale/shift: (1,1,1,Cout) f32; o_ref f32."""
    y = conv_ref[...].astype(jnp.float32) * scale_ref[...] + shift_ref[...]
    o_ref[...] = jnp.maximum(y, 0.0).astype(o_ref.dtype)


# --------------------------------------------------------------------------------------
# NHWC core (real entry point; keep activations NHWC end-to-end in a real pipeline).
# --------------------------------------------------------------------------------------
@functools.partial(jax.jit, static_argnames=("padding", "dilation", "eps"))
def aspp_block_nhwc(x_nhwc, weight_oihw, gamma, beta, *, padding, dilation, eps=1e-5):
    N, H, W, Cin = x_nhwc.shape
    Cout, Cin_w, K, _ = weight_oihw.shape
    assert Cin_w == Cin
    halo = dilation * (K - 1)
    Hp, Wp = H + 2 * padding, W + 2 * padding
    Ho, Wo = Hp - halo, Wp - halo

    TH = _pick_row_tile(Ho, Wo)        # row tile (divides Ho exactly)
    n_rt = Ho // TH
    M_t = TH * Wo

    # Group taps so the MXU contraction is >=128 where Cin allows (v5e 4x128 MXU);
    # for tiny Cin this degenerates to one small bf16 slab per tile, which is cheap.
    taps_per_group = min(K * K, max(1, -(-128 // Cin)))

    # Glue: bf16 activations padded in HBM; im2col-ordered bf16 weight matrix.
    xp = jnp.pad(x_nhwc.astype(jnp.bfloat16),
                 ((0, 0), (padding, padding), (padding, padding), (0, 0)))
    w_mat = (jnp.transpose(weight_oihw, (2, 3, 1, 0))           # (K, K, Cin, Cout)
             .reshape(K * K * Cin, Cout).astype(jnp.bfloat16))

    cparams = pltpu.CompilerParams(
        dimension_semantics=("parallel", "parallel"),
        vmem_limit_bytes=_vmem_limit_bytes(),
    )

    # ---- pass 1: conv + per-tile BN partial stats, pipelined over (batch, row-tile) ----
    # NOTE: with Cout < 128 (test config) output stores are lane-masked; production
    # Cout >= 128 is lane dense.  Padding Cout up to 128 here would cost 16x the bytes.
    kernel1 = functools.partial(conv_stats_kernel, TH=TH, Wo=Wo, K=K,
                                dilation=dilation, taps_per_group=taps_per_group)
    conv, psum, psq = pl.pallas_call(
        kernel1,
        grid=(N, n_rt),
        in_specs=[
            pl.BlockSpec((1, Hp, Wp, Cin), lambda b, r: (b, 0, 0, 0)),
            pl.BlockSpec((K * K * Cin, Cout), lambda b, r: (0, 0)),
        ],
        out_specs=(
            pl.BlockSpec((1, 1, M_t, Cout), lambda b, r: (b, r, 0, 0)),
            pl.BlockSpec((1, 1, 1, Cout), lambda b, r: (b, r, 0, 0)),
            pl.BlockSpec((1, 1, 1, Cout), lambda b, r: (b, r, 0, 0)),
        ),
        out_shape=(
            jax.ShapeDtypeStruct((N, n_rt, M_t, Cout), jnp.bfloat16),
            jax.ShapeDtypeStruct((N, n_rt, 1, Cout), jnp.float32),
            jax.ShapeDtypeStruct((N, n_rt, 1, Cout), jnp.float32),
        ),
        scratch_shapes=[pltpu.VMEM((M_t, Cout), jnp.float32)],
        compiler_params=cparams,
    )(xp, w_mat)

    # ---- tiny cross-tile stats combine (Chan/Welford, O(N*n_rt*Cout), plain JAX) ----
    cnt_tile = float(M_t)
    total = float(N * n_rt) * cnt_tile
    tile_mean = psum / cnt_tile                               # (N, n_rt, 1, Cout)
    tile_m2 = psq - psum * tile_mean                          # sum((x - tile_mean)^2)
    mean = jnp.sum(psum, axis=(0, 1, 2)) / total              # (Cout,)
    m2 = (jnp.sum(tile_m2, axis=(0, 1, 2))
          + cnt_tile * jnp.sum((tile_mean - mean) ** 2, axis=(0, 1, 2)))
    var = jnp.maximum(m2 / total, 0.0)                        # biased variance (training BN)
    scale = gamma.astype(jnp.float32) * jax.lax.rsqrt(var + eps)
    shift = beta.astype(jnp.float32) - mean * scale

    # ---- pass 2: fused y = conv*scale + shift, ReLU; pipelined over (batch, row-tile) ----
    out = pl.pallas_call(
        bn_relu_kernel,
        grid=(N, n_rt),
        in_specs=[
            pl.BlockSpec((1, 1, M_t, Cout), lambda b, r: (b, r, 0, 0)),
            pl.BlockSpec((1, 1, 1, Cout), lambda b, r: (0, 0, 0, 0)),
            pl.BlockSpec((1, 1, 1, Cout), lambda b, r: (0, 0, 0, 0)),
        ],
        out_specs=pl.BlockSpec((1, 1, M_t, Cout), lambda b, r: (b, r, 0, 0)),
        out_shape=jax.ShapeDtypeStruct((N, n_rt, M_t, Cout), jnp.float32),
        compiler_params=cparams,
    )(conv, scale.reshape(1, 1, 1, Cout), shift.reshape(1, 1, 1, Cout))

    return out.reshape(N, Ho, Wo, Cout)


# --------------------------------------------------------------------------------------
# NCHW adapter (PyTorch-facing).  Transposes are layout glue only.
# --------------------------------------------------------------------------------------
def aspp_block_forward(x_nchw, weight_oihw, gamma, beta, *, padding, dilation, eps=1e-5):
    x_nhwc = jnp.transpose(x_nchw, (0, 2, 3, 1))
    y = aspp_block_nhwc(x_nhwc, weight_oihw, gamma, beta,
                        padding=padding, dilation=dilation, eps=eps)
    return jnp.transpose(y, (0, 3, 1, 2))


# --------------------------------------------------------------------------------------
# Pure-JAX reference (f32 end-to-end) for correctness checking.
# --------------------------------------------------------------------------------------
def reference_forward(x_nchw, weight_oihw, gamma, beta, *, padding, dilation, eps=1e-5):
    conv = jax.lax.conv_general_dilated(
        x_nchw, weight_oihw, window_strides=(1, 1),
        padding=((padding, padding), (padding, padding)),
        rhs_dilation=(dilation, dilation),
        dimension_numbers=("NCHW", "OIHW", "NCHW"))
    mean = conv.mean(axis=(0, 2, 3), keepdims=True)
    var = ((conv - mean) ** 2).mean(axis=(0, 2, 3), keepdims=True)
    y = (conv - mean) / jnp.sqrt(var + eps)
    y = y * gamma.reshape(1, -1, 1, 1) + beta.reshape(1, -1, 1, 1)
    return jnp.maximum(y, 0.0)


if __name__ == "__main__":
    # ASPPBlock(in_chans=4, out_chans=8, kernel=3, padding=2, dilation=2)
    N, Cin, H, W = 2, 4, 16, 16
    Cout, K, padding, dilation = 8, 3, 2, 2

    key = jax.random.PRNGKey(0)
    kx, kw, kg, kb = jax.random.split(key, 4)
    x = jax.random.normal(kx, (N, Cin, H, W), dtype=jnp.float32)
    weight = jax.random.normal(kw, (Cout, Cin, K, K), dtype=jnp.float32) * 0.1
    # Non-trivial BN affine params to exercise the scale/shift folding path.
    gamma = 1.0 + 0.1 * jax.random.normal(kg, (Cout,), dtype=jnp.float32)
    beta = 0.1 * jax.random.normal(kb, (Cout,), dtype=jnp.float32)

    out = aspp_block_forward(x, weight, gamma, beta, padding=padding, dilation=dilation)
    out = jax.block_until_ready(out)

    ref = reference_forward(x, weight, gamma, beta, padding=padding, dilation=dilation)
    ref = jax.block_until_ready(ref)

    assert out.shape == (N, Cout, H, W), out.shape
    # Tolerance reflects the intentional bf16 precision contract (bf16 activations,
    # weights and conv intermediate; f32 accumulation + f32 BN statistics).
    max_err = float(jnp.max(jnp.abs(out - ref)))
    assert jnp.allclose(out, ref, atol=5e-2, rtol=5e-2), max_err

    print("KERNEL_OK")
</pallas_src>

<mosaic_0001>
module attributes {stable_mosaic.version = 11 : i64} {
  func.func @conv_stats_kernel(%arg0: i32, %arg1: i32, %arg2: memref<1x20x20x4xbf16, #tpu.memory_space<vmem>>, %arg3: memref<36x8xbf16, #tpu.memory_space<vmem>>, %arg4: memref<1x1x128x8xbf16, #tpu.memory_space<vmem>>, %arg5: memref<1x1x1x8xf32, #tpu.memory_space<vmem>>, %arg6: memref<1x1x1x8xf32, #tpu.memory_space<vmem>>, %arg7: memref<128x8xf32, #tpu.memory_space<vmem>>) attributes {dimension_semantics = [#tpu.dimension_semantics<parallel>, #tpu.dimension_semantics<parallel>], iteration_bounds = array<i64: 2, 2>, scalar_prefetch = 0 : i64, scratch_operands = 1 : i64, tpu.core_type = #tpu.core_type<tc>, window_params = [{transform_indices = @transform_0, window_bounds = array<i64: 1, 20, 20, 4>}, {pipeline_mode = #tpu.pipeline_mode<synchronous>, transform_indices = @transform_1, window_bounds = array<i64: 36, 8>}, {transform_indices = @transform_2, window_bounds = array<i64: 1, 1, 128, 8>}, {transform_indices = @transform_3, window_bounds = array<i64: 1, 1, 1, 8>}, {transform_indices = @transform_4, window_bounds = array<i64: 1, 1, 1, 8>}]} {
    %c8_i32 = arith.constant 8 : i32
    %0 = arith.muli %arg1, %c8_i32 : i32
    %1 = tpu.assume_multiple %0, 8 : i32
    %c0 = arith.constant 0 : index
    %2 = arith.index_cast %1 : i32 to index
    %c0_0 = arith.constant 0 : index
    %c0_1 = arith.constant 0 : index
    %3 = vector.load %arg2[%c0, %2, %c0_0, %c0_1] : memref<1x20x20x4xbf16, #tpu.memory_space<vmem>>, vector<1x12x20x4xbf16>
    %4 = vector.extract_strided_slice %3 {offsets = [0, 0, 0, 0], sizes = [1, 8, 16, 4], strides = [1, 1, 1, 1]} : vector<1x12x20x4xbf16> to vector<1x8x16x4xbf16>
    %5 = vector.extract_strided_slice %3 {offsets = [0, 0, 2, 0], sizes = [1, 8, 16, 4], strides = [1, 1, 1, 1]} : vector<1x12x20x4xbf16> to vector<1x8x16x4xbf16>
    %6 = vector.extract_strided_slice %3 {offsets = [0, 0, 4, 0], sizes = [1, 8, 16, 4], strides = [1, 1, 1, 1]} : vector<1x12x20x4xbf16> to vector<1x8x16x4xbf16>
    %7 = vector.extract_strided_slice %3 {offsets = [0, 2, 0, 0], sizes = [1, 8, 16, 4], strides = [1, 1, 1, 1]} : vector<1x12x20x4xbf16> to vector<1x8x16x4xbf16>
    %8 = vector.extract_strided_slice %3 {offsets = [0, 2, 2, 0], sizes = [1, 8, 16, 4], strides = [1, 1, 1, 1]} : vector<1x12x20x4xbf16> to vector<1x8x16x4xbf16>
    %9 = vector.extract_strided_slice %3 {offsets = [0, 2, 4, 0], sizes = [1, 8, 16, 4], strides = [1, 1, 1, 1]} : vector<1x12x20x4xbf16> to vector<1x8x16x4xbf16>
    %10 = vector.extract_strided_slice %3 {offsets = [0, 4, 0, 0], sizes = [1, 8, 16, 4], strides = [1, 1, 1, 1]} : vector<1x12x20x4xbf16> to vector<1x8x16x4xbf16>
    %11 = vector.extract_strided_slice %3 {offsets = [0, 4, 2, 0], sizes = [1, 8, 16, 4], strides = [1, 1, 1, 1]} : vector<1x12x20x4xbf16> to vector<1x8x16x4xbf16>
    %12 = vector.extract_strided_slice %3 {offsets = [0, 4, 4, 0], sizes = [1, 8, 16, 4], strides = [1, 1, 1, 1]} : vector<1x12x20x4xbf16> to vector<1x8x16x4xbf16>
    %13 = tpu.concatenate %4, %5, %6, %7, %8, %9, %10, %11, %12 in 3 : vector<1x8x16x4xbf16>, vector<1x8x16x4xbf16>, vector<1x8x16x4xbf16>, vector<1x8x16x4xbf16>, vector<1x8x16x4xbf16>, vector<1x8x16x4xbf16>, vector<1x8x16x4xbf16>, vector<1x8x16x4xbf16>, vector<1x8x16x4xbf16> -> vector<1x8x16x36xbf16>
    %14 = vector.shape_cast %13 : vector<1x8x16x36xbf16> to vector<128x36xbf16>
    %c0_2 = arith.constant 0 : index
    %c0_3 = arith.constant 0 : index
    %15 = vector.load %arg3[%c0_2, %c0_3] : memref<36x8xbf16, #tpu.memory_space<vmem>>, vector<36x8xbf16>
    %cst = arith.constant dense<0.000000e+00> : vector<128x8xf32>
    %16 = tpu.matmul %14, %15, %cst {dimension_numbers = #tpu.dot_dimension_numbers<[1], [0], [0], [1], [0, 0, 1, 1], [], []>} : vector<128x36xbf16>, vector<36x8xbf16>, vector<128x8xf32> -> vector<128x8xf32>
    %c0_4 = arith.constant 0 : index
    %c0_5 = arith.constant 0 : index
    %17 = vector.load %arg7[%c0_4, %c0_5] : memref<128x8xf32, #tpu.memory_space<vmem>>, vector<128x8xf32>
    tpu.vector_store %arg7[%c0_4, %c0_5], %16 {strides = array<i32>} : memref<128x8xf32, #tpu.memory_space<vmem>>, vector<128x8xf32>,
    %c0_6 = arith.constant 0 : index
    %c0_7 = arith.constant 0 : index
    %18 = vector.load %arg7[%c0_6, %c0_7] : memref<128x8xf32, #tpu.memory_space<vmem>>, vector<128x8xf32>
    %19 = arith.truncf %18 : vector<128x8xf32> to vector<128x8xbf16>
    %20 = vector.shape_cast %19 : vector<128x8xbf16> to vector<1x1x128x8xbf16>
    %c0_8 = arith.constant 0 : index
    %c0_9 = arith.constant 0 : index
    %c0_10 = arith.constant 0 : index
    %c0_11 = arith.constant 0 : index
    %21 = vector.load %arg4[%c0_8, %c0_9, %c0_10, %c0_11] : memref<1x1x128x8xbf16, #tpu.memory_space<vmem>>, vector<1x1x128x8xbf16>
    tpu.vector_store %arg4[%c0_8, %c0_9, %c0_10, %c0_11], %20 {strides = array<i32>} : memref<1x1x128x8xbf16, #tpu.memory_space<vmem>>, vector<1x1x128x8xbf16>,
    %cst_12 = arith.constant dense<0.000000e+00> : vector<8xf32>
    %22 = vector.multi_reduction <add>, %18, %cst_12 [0] : vector<128x8xf32> to vector<8xf32>
    %23 = vector.shape_cast %22 : vector<8xf32> to vector<1x1x1x8xf32>
    %c0_13 = arith.constant 0 : index
    %c0_14 = arith.constant 0 : index
    %c0_15 = arith.constant 0 : index
    %c0_16 = arith.constant 0 : index
    %24 = vector.load %arg5[%c0_13, %c0_14, %c0_15, %c0_16] : memref<1x1x1x8xf32, #tpu.memory_space<vmem>>, vector<1x1x1x8xf32>
    tpu.vector_store %arg5[%c0_13, %c0_14, %c0_15, %c0_16], %23 {strides = array<i32>} : memref<1x1x1x8xf32, #tpu.memory_space<vmem>>, vector<1x1x1x8xf32>,
    %25 = arith.mulf %18, %18 : vector<128x8xf32>
    %cst_17 = arith.constant dense<0.000000e+00> : vector<8xf32>
    %26 = vector.multi_reduction <add>, %25, %cst_17 [0] : vector<128x8xf32> to vector<8xf32>
    %27 = vector.shape_cast %26 : vector<8xf32> to vector<1x1x1x8xf32>
    %c0_18 = arith.constant 0 : index
    %c0_19 = arith.constant 0 : index
    %c0_20 = arith.constant 0 : index
    %c0_21 = arith.constant 0 : index
    %28 = vector.load %arg6[%c0_18, %c0_19, %c0_20, %c0_21] : memref<1x1x1x8xf32, #tpu.memory_space<vmem>>, vector<1x1x1x8xf32>
    tpu.vector_store %arg6[%c0_18, %c0_19, %c0_20, %c0_21], %27 {strides = array<i32>} : memref<1x1x1x8xf32, #tpu.memory_space<vmem>>, vector<1x1x1x8xf32>,
    return
  }
  func.func @transform_0(%arg0: i32, %arg1: i32) -> (i32, i32, i32, i32) {
    %c0_i32 = arith.constant 0 : i32
    %c0_i32_0 = arith.constant 0 : i32
    %c0_i32_1 = arith.constant 0 : i32
    %c0_i32_2 = arith.constant 0 : i32
    return %arg0, %c0_i32, %c0_i32_0, %c0_i32_1 : i32, i32, i32, i32
  }
  func.func @transform_1(%arg0: i32, %arg1: i32) -> (i32, i32) {
    %c0_i32 = arith.constant 0 : i32
    %c0_i32_0 = arith.constant 0 : i32
    %c0_i32_1 = arith.constant 0 : i32
    return %c0_i32, %c0_i32_0 : i32, i32
  }
  func.func @transform_2(%arg0: i32, %arg1: i32) -> (i32, i32, i32, i32) {
    %c0_i32 = arith.constant 0 : i32
    %c0_i32_0 = arith.constant 0 : i32
    %c0_i32_1 = arith.constant 0 : i32
    return %arg0, %arg1, %c0_i32, %c0_i32_0 : i32, i32, i32, i32
  }
  func.func @transform_3(%arg0: i32, %arg1: i32) -> (i32, i32, i32, i32) {
    %c0_i32 = arith.constant 0 : i32
    %c0_i32_0 = arith.constant 0 : i32
    %c0_i32_1 = arith.constant 0 : i32
    return %arg0, %arg1, %c0_i32, %c0_i32_0 : i32, i32, i32, i32
  }
  func.func @transform_4(%arg0: i32, %arg1: i32) -> (i32, i32, i32, i32) {
    %c0_i32 = arith.constant 0 : i32
    %c0_i32_0 = arith.constant 0 : i32
    %c0_i32_1 = arith.constant 0 : i32
    return %arg0, %arg1, %c0_i32, %c0_i32_0 : i32, i32, i32, i32
  }
}

module attributes {stable_mosaic.version = 11 : i64} {
  func.func @bn_relu_kernel(%arg0: i32, %arg1: i32, %arg2: memref<1x1x128x8xbf16, #tpu.memory_space<vmem>>, %arg3: memref<1x1x1x8xf32, #tpu.memory_space<vmem>>, %arg4: memref<1x1x1x8xf32, #tpu.memory_space<vmem>>, %arg5: memref<1x1x128x8xf32, #tpu.memory_space<vmem>>) attributes {dimension_semantics = [#tpu.dimension_semantics<parallel>, #tpu.dimension_semantics<parallel>], iteration_bounds = array<i64: 2, 2>, scalar_prefetch = 0 : i64, scratch_operands = 0 : i64, tpu.core_type = #tpu.core_type<tc>, window_params = [{transform_indices = @transform_0, window_bounds = array<i64: 1, 1, 128, 8>}, {pipeline_mode = #tpu.pipeline_mode<synchronous>, transform_indices = @transform_1, window_bounds = array<i64: 1, 1, 1, 8>}, {pipeline_mode = #tpu.pipeline_mode<synchronous>, transform_indices = @transform_2, window_bounds = array<i64: 1, 1, 1, 8>}, {transform_indices = @transform_3, window_bounds = array<i64: 1, 1, 128, 8>}]} {
    %c0 = arith.constant 0 : index
    %c0_0 = arith.constant 0 : index
    %c0_1 = arith.constant 0 : index
    %c0_2 = arith.constant 0 : index
    %0 = vector.load %arg2[%c0, %c0_0, %c0_1, %c0_2] : memref<1x1x128x8xbf16, #tpu.memory_space<vmem>>, vector<1x1x128x8xbf16>
    %1 = arith.extf %0 : vector<1x1x128x8xbf16> to vector<1x1x128x8xf32>
    %c0_3 = arith.constant 0 : index
    %c0_4 = arith.constant 0 : index
    %c0_5 = arith.constant 0 : index
    %c0_6 = arith.constant 0 : index
    %2 = vector.load %arg3[%c0_3, %c0_4, %c0_5, %c0_6] : memref<1x1x1x8xf32, #tpu.memory_space<vmem>>, vector<1x1x1x8xf32>
    %3 = vector.broadcast %2 : vector<1x1x1x8xf32> to vector<1x1x128x8xf32>
    %4 = arith.mulf %1, %3 : vector<1x1x128x8xf32>
    %c0_7 = arith.constant 0 : index
    %c0_8 = arith.constant 0 : index
    %c0_9 = arith.constant 0 : index
    %c0_10 = arith.constant 0 : index
    %5 = vector.load %arg4[%c0_7, %c0_8, %c0_9, %c0_10] : memref<1x1x1x8xf32, #tpu.memory_space<vmem>>, vector<1x1x1x8xf32>
    %6 = vector.broadcast %5 : vector<1x1x1x8xf32> to vector<1x1x128x8xf32>
    %7 = arith.addf %4, %6 : vector<1x1x128x8xf32>
    %cst = arith.constant 0.000000e+00 : f32
    %8 = vector.broadcast %cst : f32 to vector<1x1x128x8xf32>
    %9 = arith.maximumf %7, %8 : vector<1x1x128x8xf32>
    %c0_11 = arith.constant 0 : index
    %c0_12 = arith.constant 0 : index
    %c0_13 = arith.constant 0 : index
    %c0_14 = arith.constant 0 : index
    %10 = vector.load %arg5[%c0_11, %c0_12, %c0_13, %c0_14] : memref<1x1x128x8xf32, #tpu.memory_space<vmem>>, vector<1x1x128x8xf32>
    tpu.vector_store %arg5[%c0_11, %c0_12, %c0_13, %c0_14], %9 {strides = array<i32>} : memref<1x1x128x8xf32, #tpu.memory_space<vmem>>, vector<1x1x128x8xf32>,
    return
  }
  func.func @transform_0(%arg0: i32, %arg1: i32) -> (i32, i32, i32, i32) {
    %c0_i32 = arith.constant 0 : i32
    %c0_i32_0 = arith.constant 0 : i32
    %c0_i32_1 = arith.constant 0 : i32
    return %arg0, %arg1, %c0_i32, %c0_i32_0 : i32, i32, i32, i32
  }
  func.func @transform_1(%arg0: i32, %arg1: i32) -> (i32, i32, i32, i32) {
    %c0_i32 = arith.constant 0 : i32
    %c0_i32_0 = arith.constant 0 : i32
    %c0_i32_1 = arith.constant 0 : i32
    %c0_i32_2 = arith.constant 0 : i32
    %c0_i32_3 = arith.constant 0 : i32
    return %c0_i32, %c0_i32_0, %c0_i32_1, %c0_i32_2 : i32, i32, i32, i32
  }
  func.func @transform_2(%arg0: i32, %arg1: i32) -> (i32, i32, i32, i32) {
    %c0_i32 = arith.constant 0 : i32
    %c0_i32_0 = arith.constant 0 : i32
    %c0_i32_1 = arith.constant 0 : i32
    %c0_i32_2 = arith.constant 0 : i32
    %c0_i32_3 = arith.constant 0 : i32
    return %c0_i32, %c0_i32_0, %c0_i32_1, %c0_i32_2 : i32, i32, i32, i32
  }
  func.func @transform_3(%arg0: i32, %arg1: i32) -> (i32, i32, i32, i32) {
    %c0_i32 = arith.constant 0 : i32
    %c0_i32_0 = arith.constant 0 : i32
    %c0_i32_1 = arith.constant 0 : i32
    return %arg0, %arg1, %c0_i32, %c0_i32_0 : i32, i32, i32, i32
  }
}

</mosaic_0001>

<llo_original>
// kernel: aspp_block_nhwc.3
$region0: #{aspp_block_nhwc.3}
  #allocation0 [shape = 'u32[]', space=smem, size = 0x4, offset = 0x4, fixed_abs, tag = 'smem constant byte address 0x4 - core index']
  #allocation1 [shape = 'u32[144,128]{1,0:T(1,128)}', space=vmem, size = 0x12000, scoped, tag = 'internal scratch']
  %s0 = inlined_call_operand.vmem [shape: bf16[2,2,128,8], index: 0, kind: input, shape index: {}]
  %s1 = inlined_call_operand.vmem [shape: f32[1,1,1,8], index: 1, kind: input, shape index: {}]
  %s2 = inlined_call_operand.vmem [shape: f32[1,1,1,8], index: 2, kind: input, shape index: {}]
  %s3 = inlined_call_operand.vmem [shape: f32[2,2,128,8], index: 3, kind: output, shape index: {}]
  %s4 = sld [smem:[#allocation0]]
  $region45: #{aspp_block_nhwc.3} parent=0
    _
  %s6 = ssub.s32 1, %s4
  %s7 = scalar_select 0, %s6, %s4
  loop: start=0, step=1, limit=6
  $region2: #{aspp_block_nhwc.3} parent=0 // loop_pre_header
    _
  $region3: #{aspp_block_nhwc.3} parent=0 // loop_header
    %s9 = sphi 0, %s13
    %p10 = scmp.ge.s32.totalorder %s9, 6
    %s16 = sphi 0, %s28
    %s17 = sphi 0, %s24
    %s18 = sphi 0, %s16
    %s19 = sphi 0, %s17
    %s20 = sphi 0, %s18
    %s21 = sphi 0, %s19
    %s33 = sphi 0, %s35
    %s36 = sphi 0, %s33
    %s37 = sphi 0, %s36
    %s53 = sphi 0, %s37
    %s57 = sphi 0, %s57
    %s59 = sphi 0, %s57
    %s60 = sphi 0, %s59
    %s74 = sphi 0, %s60
    %s78 = sphi 0, %s78
    %s80 = sphi 0, %s78
    %s81 = sphi 0, %s80
    %s95 = sphi 0, %s81
    %s103 = sphi 0, %s105
    %s106 = sphi 0, %s103
    %s107 = sphi 0, %s106
    %s123 = sphi 0, %s107
  $region4: #{aspp_block_nhwc.3} parent=0 // loop_header_branch
    %12 = sbr.rel (%p10) target = $region8
  $region5: #{aspp_block_nhwc.3} parent=0 // loop_body
    %s14 = ssub.s32 %s9, 1
    %s15 = ssub.s32 %s9, 2
    %s22 = sadd.s32 1, %s17
    %p23 = scmp.ge.s32.totalorder %s22, 2
    %s24 = scalar_select %p23, 0, %s22
    %s25 = sadd.s32 1, %s16
    %s26 = scalar_select %p23, %s25, %s16
    %p27 = scmp.ge.s32.totalorder %s26, 2
    %s28 = scalar_select %p27, 0, %s26
    %s29 = ssub.s32 %s16, %s28
    %s30 = ssub.s32 %s17, %s24
    %s31 = sor.u32 %s29, %s30
    %p32 = scmp.eq.s32.totalorder %s31, 0
    %s34 = sadd.s32 %s33, 1
    %s35 = scalar_select %p32, %s33, %s34
    %p38 = pneg %p32
    %p39 = scmp.eq.s32.totalorder %s9, 3
    %p40 = por %p38, %p39
    %p41 = scmp.ne.s32.totalorder %s33, %s36
    %p42 = scmp.eq.s32.totalorder %s9, 0
    %p43 = por %p41, %p42
    %p44 = scmp.ne.s32.totalorder %s33, %s36
    %p45 = scmp.eq.s32.totalorder %s14, 3
    %p46 = por %p44, %p45
    %p47 = scmp.ne.s32.totalorder %s36, %s37
    %p48 = scmp.eq.s32.totalorder %s14, 0
    %p49 = por %p47, %p48
    %p50 = scmp.ne.s32.totalorder %s36, %s37
    %p51 = scmp.eq.s32.totalorder %s15, 3
    %p52 = por %p50, %p51
    %p54 = scmp.ne.s32.totalorder %s37, %s53
    %p55 = scmp.eq.s32.totalorder %s15, 0
    %p56 = por %p54, %p55
    %s58 = sadd.s32 %s57, 1
    %p61 = scmp.eq.s32.totalorder %s9, 3
    %p62 = scmp.ne.s32.totalorder %s57, %s59
    %p63 = scmp.eq.s32.totalorder %s9, 0
    %p64 = por %p62, %p63
    %p65 = scmp.ne.s32.totalorder %s57, %s59
    %p66 = scmp.eq.s32.totalorder %s14, 3
    %p67 = por %p65, %p66
    %p68 = scmp.ne.s32.totalorder %s59, %s60
    %p69 = scmp.eq.s32.totalorder %s14, 0
    %p70 = por %p68, %p69
    %p71 = scmp.ne.s32.totalorder %s59, %s60
    %p72 = scmp.eq.s32.totalorder %s15, 3
    %p73 = por %p71, %p72
    %p75 = scmp.ne.s32.totalorder %s60, %s74
    %p76 = scmp.eq.s32.totalorder %s15, 0
    %p77 = por %p75, %p76
    %s79 = sadd.s32 %s78, 1
    %p82 = scmp.eq.s32.totalorder %s9, 3
    %p83 = scmp.ne.s32.totalorder %s78, %s80
    %p84 = scmp.eq.s32.totalorder %s9, 0
    %p85 = por %p83, %p84
    %p86 = scmp.ne.s32.totalorder %s78, %s80
    %p87 = scmp.eq.s32.totalorder %s14, 3
    %p88 = por %p86, %p87
    %p89 = scmp.ne.s32.totalorder %s80, %s81
    %p90 = scmp.eq.s32.totalorder %s14, 0
    %p91 = por %p89, %p90
    %p92 = scmp.ne.s32.totalorder %s80, %s81
    %p93 = scmp.eq.s32.totalorder %s15, 3
    %p94 = por %p92, %p93
    %p96 = scmp.ne.s32.totalorder %s81, %s95
    %p97 = scmp.eq.s32.totalorder %s15, 0
    %p98 = por %p96, %p97
    %s99 = ssub.s32 %s16, %s28
    %s100 = ssub.s32 %s17, %s24
    %s101 = sor.u32 %s99, %s100
    %p102 = scmp.eq.s32.totalorder %s101, 0
    %s104 = sadd.s32 %s103, 1
    %s105 = scalar_select %p102, %s103, %s104
    %p108 = pneg %p102
    %p109 = scmp.eq.s32.totalorder %s9, 3
    %p110 = por %p108, %p109
    %p111 = scmp.ne.s32.totalorder %s103, %s106
    %p112 = scmp.eq.s32.totalorder %s9, 0
    %p113 = por %p111, %p112
    %p114 = scmp.ne.s32.totalorder %s103, %s106
    %p115 = scmp.eq.s32.totalorder %s14, 3
    %p116 = por %p114, %p115
    %p117 = scmp.ne.s32.totalorder %s106, %s107
    %p118 = scmp.eq.s32.totalorder %s14, 0
    %p119 = por %p117, %p118
    %p120 = scmp.ne.s32.totalorder %s106, %s107
    %p121 = scmp.eq.s32.totalorder %s15, 3
    %p122 = por %p120, %p121
    %p124 = scmp.ne.s32.totalorder %s107, %s123
    %p125 = scmp.eq.s32.totalorder %s15, 0
    %p126 = por %p124, %p125
    %p127 = scmp.le.s32.totalorder 1, %s9
    %p128 = scmp.lt.s32.totalorder %s9, 5
    %p129 = pnand %p127, %p128
    %p130 = pneg %p129
    // Predicated region
    $region9: #{aspp_block_nhwc.3} parent=5 // pred_check
      _
    $region10: #{aspp_block_nhwc.3} parent=5 // pred_check_branch
      %132 = sbr.rel (%p129) target = $region12
    $region11: #{aspp_block_nhwc.3} parent=5 // pred_region
      %s133 = ssub.s32 %s9, 1
      // Predicated region
      $region13: #{aspp_block_nhwc.3} parent=11 // pred_check
        %p134 = pneg %p70
      $region14: #{aspp_block_nhwc.3} parent=11 // pred_check_branch
        %136 = sbr.rel (%p134) target = $region16
      $region15: #{aspp_block_nhwc.3} parent=11 // pred_region
        _
      $region16: #{aspp_block_nhwc.3} parent=11 // pred_fallthru
        _
      // Predicated region
      $region17: #{aspp_block_nhwc.3} parent=11 // pred_check
        %p137 = pneg %p91
      $region18: #{aspp_block_nhwc.3} parent=11 // pred_check_branch
        %139 = sbr.rel (%p137) target = $region20
      $region19: #{aspp_block_nhwc.3} parent=11 // pred_region
        _
      $region20: #{aspp_block_nhwc.3} parent=11 // pred_fallthru
        _
    $region12: #{aspp_block_nhwc.3} parent=5 // pred_fallthru
      _
    %p140 = scmp.lt.s32.totalorder %s9, 4
    // Predicated region
    $region21: #{aspp_block_nhwc.3} parent=5 // pred_check
      %p141 = pneg %p140
    $region22: #{aspp_block_nhwc.3} parent=5 // pred_check_branch
      %143 = sbr.rel (%p141) target = $region24
    $region23: #{aspp_block_nhwc.3} parent=5 // pred_region
      // Predicated region
      $region25: #{aspp_block_nhwc.3} parent=23 // pred_check
        %p144 = pneg %p43
      $region26: #{aspp_block_nhwc.3} parent=23 // pred_check_branch
        %146 = sbr.rel (%p144) target = $region28
      $region27: #{aspp_block_nhwc.3} parent=23 // pred_region
        %p147 = scmp.lt.s32.totalorder %s16, 1
        %s148 = scalar_select %p147, %s16, 1
        %p149 = scmp.lt.s32.totalorder %s17, 1
        %s150 = scalar_select %p149, %s17, 1
        %s151 = smul.addr %s150, 16
        %s152 = smul.addr %s148, 32
        %s153 = sadd.s32 %s151, %s152
        %s154 = smul.addr %s153, 4
        %s155 = scalar_lea.vmem %s0, %s154
      $region28: #{aspp_block_nhwc.3} parent=23 // pred_fallthru
        _
    $region24: #{aspp_block_nhwc.3} parent=5 // pred_fallthru
      _
    %p156 = scmp.le.s32.totalorder 1, %s9
    %p157 = scmp.lt.s32.totalorder %s9, 5
    %p158 = pnand %p156, %p157
    %p159 = pneg %p158
    // Predicated region
    $region29: #{aspp_block_nhwc.3} parent=5 // pred_check
      _
    $region30: #{aspp_block_nhwc.3} parent=5 // pred_check_branch
      %161 = sbr.rel (%p158) target = $region32
    $region31: #{aspp_block_nhwc.3} parent=5 // pred_region
      %s162 = ssub.s32 %s9, 1
      %p163 = scmp.lt.s32.totalorder %s18, 1
      %s164 = scalar_select %p163, %s18, 1
      %p165 = scmp.lt.s32.totalorder %s19, 1
      %s166 = scalar_select %p165, %s19, 1
      %s167 = smul.addr %s166, 16
      %s168 = smul.addr %s164, 32
      %s169 = sadd.s32 %s167, %s168
      %s170 = smul.addr %s169, 4
      %s171 = scalar_lea.vmem %s0, %s170
      %p172 = pneg %p49
      %p173 = pneg %p46
      %p174 = pneg %p70
      %p175 = pneg %p67
      %p176 = pneg %p91
      %p177 = pneg %p88
      %p178 = pneg %p119
      %p179 = pneg %p116
      %p180 = scmp.lt.s32.totalorder %s18, 1
      %s181 = scalar_select %p180, %s18, 1
      %p182 = scmp.lt.s32.totalorder %s19, 1
      %s183 = scalar_select %p182, %s19, 1
      %s184 = smul.addr %s183, 16
      %s185 = smul.addr %s181, 32
      %s186 = sadd.s32 %s184, %s185
      %s187 = smul.addr %s186, 8
      %s188 = scalar_lea.vmem %s3, %s187
      %p189 = scmp.lt.s32.totalorder %s18, 1
      %s190 = scalar_select %p189, %s18, 1
      %p191 = scmp.lt.s32.totalorder %s19, 1
      %s192 = scalar_select %p191, %s19, 1
      %s193 = smul.addr %s192, 16
      %s194 = smul.addr %s190, 32
      %s195 = sadd.s32 %s193, %s194
      %s196 = smul.addr %s195, 4
      %s197 = scalar_lea.vmem %s0, %s196
      %p198 = scmp.lt.s32.totalorder %s18, 1
      %s199 = scalar_select %p198, %s18, 1
      %p200 = scmp.lt.s32.totalorder %s19, 1
      %s201 = scalar_select %p200, %s19, 1
      %s202 = smul.addr %s201, 16
      %s203 = smul.addr %s199, 32
      %s204 = sadd.s32 %s202, %s203
      %s205 = smul.addr %s204, 8
      %s206 = scalar_lea.vmem %s3, %s205
      %v207 = vld [vmem:[%s197] sm:$0xf]
      %v208 = vld [vmem:[%s197 + $0x4] sm:$0xf]
      %v209 = vld [vmem:[%s197 + $0x8] sm:$0xf]
      %v210 = vld [vmem:[%s197 + $0xc] sm:$0xf]
      %v211 = vld [vmem:[%s197 + $0x10] sm:$0xf]
      %v212 = vld [vmem:[%s197 + $0x14] sm:$0xf]
      %v213 = vld [vmem:[%s197 + $0x18] sm:$0xf]
      %v214 = vld [vmem:[%s197 + $0x1c] sm:$0xf]
      %v215 = vld [vmem:[%s197 + $0x20] sm:$0xf]
      %v216 = vld [vmem:[%s197 + $0x24] sm:$0xf]
      %v217 = vld [vmem:[%s197 + $0x28] sm:$0xf]
      %v218 = vld [vmem:[%s197 + $0x2c] sm:$0xf]
      %v219 = vld [vmem:[%s197 + $0x30] sm:$0xf]
      %v220 = vld [vmem:[%s197 + $0x34] sm:$0xf]
      %v221 = vld [vmem:[%s197 + $0x38] sm:$0xf]
      %v222 = vld [vmem:[%s197 + $0x3c] sm:$0xf]
      %v223 = vunpack.c.l.bf16 %v207
      %v224 = vunpack.c.l.bf16 %v208
      %v225 = vunpack.c.l.bf16 %v209
      %v226 = vunpack.c.l.bf16 %v210
      %v227 = vunpack.c.l.bf16 %v211
      %v228 = vunpack.c.l.bf16 %v212
      %v229 = vunpack.c.l.bf16 %v213
      %v230 = vunpack.c.l.bf16 %v214
      %v231 = vunpack.c.l.bf16 %v215
      %v232 = vunpack.c.l.bf16 %v216
      %v233 = vunpack.c.l.bf16 %v217
      %v234 = vunpack.c.l.bf16 %v218
      %v235 = vunpack.c.l.bf16 %v219
      %v236 = vunpack.c.l.bf16 %v220
      %v237 = vunpack.c.l.bf16 %v221
      %v238 = vunpack.c.l.bf16 %v222
      %v239 = vld [vmem:[%s1] sm:$0x1]
      %v241 = vlaneseq
      %v242 = vshrl.u32 %v241, 7
      %v243 = vsub.s32 0, %v242
      %v244 = vrot.slane %v239, %v243
      %v246 = vmul.f32 %v223, %v244
      %v247 = vmul.f32 %v224, %v244
      %v248 = vmul.f32 %v225, %v244
      %v249 = vmul.f32 %v226, %v244
      %v250 = vmul.f32 %v227, %v244
      %v251 = vmul.f32 %v228, %v244
      %v252 = vmul.f32 %v229, %v244
      %v253 = vmul.f32 %v230, %v244
      %v254 = vmul.f32 %v231, %v244
      %v255 = vmul.f32 %v232, %v244
      %v256 = vmul.f32 %v233, %v244
      %v257 = vmul.f32 %v234, %v244
      %v258 = vmul.f32 %v235, %v244
      %v259 = vmul.f32 %v236, %v244
      %v260 = vmul.f32 %v237, %v244
      %v261 = vmul.f32 %v238, %v244
      %v262 = vld [vmem:[%s2] sm:$0x1]
      %v264 = vlaneseq
      %v265 = vshrl.u32 %v264, 7
      %v266 = vsub.s32 0, %v265
      %v267 = vrot.slane %v262, %v266
      %v269 = vadd.f32 %v246, %v267
      %v270 = vadd.f32 %v247, %v267
      %v271 = vadd.f32 %v248, %v267
      %v272 = vadd.f32 %v249, %v267
      %v273 = vadd.f32 %v250, %v267
      %v274 = vadd.f32 %v251, %v267
      %v275 = vadd.f32 %v252, %v267
      %v276 = vadd.f32 %v253, %v267
      %v277 = vadd.f32 %v254, %v267
      %v278 = vadd.f32 %v255, %v267
      %v279 = vadd.f32 %v256, %v267
      %v280 = vadd.f32 %v257, %v267
      %v281 = vadd.f32 %v258, %v267
      %v282 = vadd.f32 %v259, %v267
      %v283 = vadd.f32 %v260, %v267
      %v284 = vadd.f32 %v261, %v267
      %v285 = vmax.f32 %v269, 0.0
      %v286 = vmax.f32 %v270, 0.0
      %v287 = vmax.f32 %v271, 0.0
      %v288 = vmax.f32 %v272, 0.0
      %v289 = vmax.f32 %v273, 0.0
      %v290 = vmax.f32 %v274, 0.0
      %v291 = vmax.f32 %v275, 0.0
      %v292 = vmax.f32 %v276, 0.0
      %v293 = vmax.f32 %v277, 0.0
      %v294 = vmax.f32 %v278, 0.0
      %v295 = vmax.f32 %v279, 0.0
      %v296 = vmax.f32 %v280, 0.0
      %v297 = vmax.f32 %v281, 0.0
      %v298 = vmax.f32 %v282, 0.0
      %v299 = vmax.f32 %v283, 0.0
      %v300 = vmax.f32 %v284, 0.0
      %vm301 = vcmask 64512
      %302 = vst.msk [vmem:[%s206] sm:$0xff] %vm301, %v285
      %303 = vst.msk [vmem:[%s206 + $0x8] sm:$0xff] %vm301, %v286
      %304 = vst.msk [vmem:[%s206 + $0x10] sm:$0xff] %vm301, %v287
      %305 = vst.msk [vmem:[%s206 + $0x18] sm:$0xff] %vm301, %v288
      %306 = vst.msk [vmem:[%s206 + $0x20] sm:$0xff] %vm301, %v289
      %307 = vst.msk [vmem:[%s206 + $0x28] sm:$0xff] %vm301, %v290
      %308 = vst.msk [vmem:[%s206 + $0x30] sm:$0xff] %vm301, %v291
      %309 = vst.msk [vmem:[%s206 + $0x38] sm:$0xff] %vm301, %v292
      %310 = vst.msk [vmem:[%s206 + $0x40] sm:$0xff] %vm301, %v293
      %311 = vst.msk [vmem:[%s206 + $0x48] sm:$0xff] %vm301, %v294
      %312 = vst.msk [vmem:[%s206 + $0x50] sm:$0xff] %vm301, %v295
      %313 = vst.msk [vmem:[%s206 + $0x58] sm:$0xff] %vm301, %v296
      %314 = vst.msk [vmem:[%s206 + $0x60] sm:$0xff] %vm301, %v297
      %315 = vst.msk [vmem:[%s206 + $0x68] sm:$0xff] %vm301, %v298
      %316 = vst.msk [vmem:[%s206 + $0x70] sm:$0xff] %vm301, %v299
      %317 = vst.msk [vmem:[%s206 + $0x78] sm:$0xff] %vm301, %v300
      %p318 = scmp.lt.s32.totalorder %s18, 1
      %s319 = scalar_select %p318, %s18, 1
      %p320 = scmp.lt.s32.totalorder %s19, 1
      %s321 = scalar_select %p320, %s19, 1
      %s322 = smul.addr %s321, 16
      %s323 = smul.addr %s319, 32
      %s324 = sadd.s32 %s322, %s323
      %s325 = smul.addr %s324, 8
      %s326 = scalar_lea.vmem %s3, %s325
      // Predicated region
      $region33: #{aspp_block_nhwc.3} parent=31 // pred_check
        %p327 = pneg %p116
      $region34: #{aspp_block_nhwc.3} parent=31 // pred_check_branch
        %329 = sbr.rel (%p327) target = $region36
      $region35: #{aspp_block_nhwc.3} parent=31 // pred_region
        _
      $region36: #{aspp_block_nhwc.3} parent=31 // pred_fallthru
        _
    $region32: #{aspp_block_nhwc.3} parent=5 // pred_fallthru
      _
    %p330 = scmp.le.s32.totalorder 2, %s9
    // Predicated region
    $region37: #{aspp_block_nhwc.3} parent=5 // pred_check
      %p331 = pneg %p330
    $region38: #{aspp_block_nhwc.3} parent=5 // pred_check_branch
      %333 = sbr.rel (%p331) target = $region40
    $region39: #{aspp_block_nhwc.3} parent=5 // pred_region
      %s334 = ssub.s32 %s9, 2
      // Predicated region
      $region41: #{aspp_block_nhwc.3} parent=39 // pred_check
        %p335 = pneg %p122
      $region42: #{aspp_block_nhwc.3} parent=39 // pred_check_branch
        %337 = sbr.rel (%p335) target = $region44
      $region43: #{aspp_block_nhwc.3} parent=39 // pred_region
        %p338 = scmp.lt.s32.totalorder %s20, 1
        %s339 = scalar_select %p338, %s20, 1
        %p340 = scmp.lt.s32.totalorder %s21, 1
        %s341 = scalar_select %p340, %s21, 1
        %s342 = smul.addr %s341, 16
        %s343 = smul.addr %s339, 32
        %s344 = sadd.s32 %s342, %s343
        %s345 = smul.addr %s344, 8
        %s346 = scalar_lea.vmem %s3, %s345
      $region44: #{aspp_block_nhwc.3} parent=39 // pred_fallthru
        _
    $region40: #{aspp_block_nhwc.3} parent=5 // pred_fallthru
      _
  $region6: #{aspp_block_nhwc.3} parent=0 // loop_footer
    %s13 = sadd.s32 1, %s9
  $region7: #{aspp_block_nhwc.3} parent=0 // loop_footer_branch
    %8 = sbr.rel target = $region3
  $region8: #{aspp_block_nhwc.3} parent=0 // loop_exit
    _

// kernel: aspp_block_nhwc.2
$region0: #{aspp_block_nhwc.2}
  #allocation0 [shape = 'u32[]', space=smem, size = 0x4, offset = 0x4, fixed_abs, tag = 'smem constant byte address 0x4 - core index']
  #allocation1 [shape = 'u32[144,128]{1,0:T(1,128)}', space=vmem, size = 0x12000, scoped, tag = 'internal scratch']
  #allocation2 [shape = 'f32[128,8]{1,0:T(8,128)}', space=vmem, size = 0x10000, scoped, tag = 'scratch operand']
  %s0 = inlined_call_operand.vmem [shape: bf16[2,20,20,4], index: 0, kind: input, shape index: {}]
  %s1 = inlined_call_operand.vmem [shape: bf16[36,8], index: 1, kind: input, shape index: {}]
  %s2 = inlined_call_operand.vmem [shape: bf16[2,2,128,8], index: 2, kind: output, shape index: {0}]
  %s3 = inlined_call_operand.vmem [shape: f32[2,2,1,8], index: 3, kind: output, shape index: {1}]
  %s4 = inlined_call_operand.vmem [shape: f32[2,2,1,8], index: 4, kind: output, shape index: {2}]
  %5 = xla_tuple %s2, %s3, %s4
  %s6 = sld [smem:[#allocation0]]
  $region57: #{aspp_block_nhwc.2} parent=0
    _
  %s8 = ssub.s32 1, %s6
  %s9 = scalar_select 0, %s8, %s6
  loop: start=0, step=1, limit=6
  $region2: #{aspp_block_nhwc.2} parent=0 // loop_pre_header
    _
  $region3: #{aspp_block_nhwc.2} parent=0 // loop_header
    %s11 = sphi 0, %s15
    %p12 = scmp.ge.s32.totalorder %s11, 6
    %s18 = sphi 0, %s30
    %s19 = sphi 0, %s26
    %s20 = sphi 0, %s18
    %s21 = sphi 0, %s19
    %s22 = sphi 0, %s20
    %s23 = sphi 0, %s21
    %s33 = sphi 0, %s35
    %s36 = sphi 0, %s33
    %s37 = sphi 0, %s36
    %s53 = sphi 0, %s37
    %s57 = sphi 0, %s57
    %s59 = sphi 0, %s57
    %s60 = sphi 0, %s59
    %s74 = sphi 0, %s60
    %s82 = sphi 0, %s84
    %s85 = sphi 0, %s82
    %s86 = sphi 0, %s85
    %s102 = sphi 0, %s86
    %s110 = sphi 0, %s112
    %s113 = sphi 0, %s110
    %s114 = sphi 0, %s113
    %s130 = sphi 0, %s114
    %s138 = sphi 0, %s140
    %s141 = sphi 0, %s138
    %s142 = sphi 0, %s141
    %s158 = sphi 0, %s142
  $region4: #{aspp_block_nhwc.2} parent=0 // loop_header_branch
    %14 = sbr.rel (%p12) target = $region8
  $region5: #{aspp_block_nhwc.2} parent=0 // loop_body
    %s16 = ssub.s32 %s11, 1
    %s17 = ssub.s32 %s11, 2
    %s24 = sadd.s32 1, %s19
    %p25 = scmp.ge.s32.totalorder %s24, 2
    %s26 = scalar_select %p25, 0, %s24
    %s27 = sadd.s32 1, %s18
    %s28 = scalar_select %p25, %s27, %s18
    %p29 = scmp.ge.s32.totalorder %s28, 2
    %s30 = scalar_select %p29, 0, %s28
    %s31 = ssub.s32 %s18, %s30
    %p32 = scmp.eq.s32.totalorder %s31, 0
    %s34 = sadd.s32 %s33, 1
    %s35 = scalar_select %p32, %s33, %s34
    %p38 = pneg %p32
    %p39 = scmp.eq.s32.totalorder %s11, 3
    %p40 = por %p38, %p39
    %p41 = scmp.ne.s32.totalorder %s33, %s36
    %p42 = scmp.eq.s32.totalorder %s11, 0
    %p43 = por %p41, %p42
    %p44 = scmp.ne.s32.totalorder %s33, %s36
    %p45 = scmp.eq.s32.totalorder %s16, 3
    %p46 = por %p44, %p45
    %p47 = scmp.ne.s32.totalorder %s36, %s37
    %p48 = scmp.eq.s32.totalorder %s16, 0
    %p49 = por %p47, %p48
    %p50 = scmp.ne.s32.totalorder %s36, %s37
    %p51 = scmp.eq.s32.totalorder %s17, 3
    %p52 = por %p50, %p51
    %p54 = scmp.ne.s32.totalorder %s37, %s53
    %p55 = scmp.eq.s32.totalorder %s17, 0
    %p56 = por %p54, %p55
    %s58 = sadd.s32 %s57, 1
    %p61 = scmp.eq.s32.totalorder %s11, 3
    %p62 = scmp.ne.s32.totalorder %s57, %s59
    %p63 = scmp.eq.s32.totalorder %s11, 0
    %p64 = por %p62, %p63
    %p65 = scmp.ne.s32.totalorder %s57, %s59
    %p66 = scmp.eq.s32.totalorder %s16, 3
    %p67 = por %p65, %p66
    %p68 = scmp.ne.s32.totalorder %s59, %s60
    %p69 = scmp.eq.s32.totalorder %s16, 0
    %p70 = por %p68, %p69
    %p71 = scmp.ne.s32.totalorder %s59, %s60
    %p72 = scmp.eq.s32.totalorder %s17, 3
    %p73 = por %p71, %p72
    %p75 = scmp.ne.s32.totalorder %s60, %s74
    %p76 = scmp.eq.s32.totalorder %s17, 0
    %p77 = por %p75, %p76
    %s78 = ssub.s32 %s18, %s30
    %s79 = ssub.s32 %s19, %s26
    %s80 = sor.u32 %s78, %s79
    %p81 = scmp.eq.s32.totalorder %s80, 0
    %s83 = sadd.s32 %s82, 1
    %s84 = scalar_select %p81, %s82, %s83
    %p87 = pneg %p81
    %p88 = scmp.eq.s32.totalorder %s11, 3
    %p89 = por %p87, %p88
    %p90 = scmp.ne.s32.totalorder %s82, %s85
    %p91 = scmp.eq.s32.totalorder %s11, 0
    %p92 = por %p90, %p91
    %p93 = scmp.ne.s32.totalorder %s82, %s85
    %p94 = scmp.eq.s32.totalorder %s16, 3
    %p95 = por %p93, %p94
    %p96 = scmp.ne.s32.totalorder %s85, %s86
    %p97 = scmp.eq.s32.totalorder %s16, 0
    %p98 = por %p96, %p97
    %p99 = scmp.ne.s32.totalorder %s85, %s86
    %p100 = scmp.eq.s32.totalorder %s17, 3
    %p101 = por %p99, %p100
    %p103 = scmp.ne.s32.totalorder %s86, %s102
    %p104 = scmp.eq.s32.totalorder %s17, 0
    %p105 = por %p103, %p104
    %s106 = ssub.s32 %s18, %s30
    %s107 = ssub.s32 %s19, %s26
    %s108 = sor.u32 %s106, %s107
    %p109 = scmp.eq.s32.totalorder %s108, 0
    %s111 = sadd.s32 %s110, 1
    %s112 = scalar_select %p109, %s110, %s111
    %p115 = pneg %p109
    %p116 = scmp.eq.s32.totalorder %s11, 3
    %p117 = por %p115, %p116
    %p118 = scmp.ne.s32.totalorder %s110, %s113
    %p119 = scmp.eq.s32.totalorder %s11, 0
    %p120 = por %p118, %p119
    %p121 = scmp.ne.s32.totalorder %s110, %s113
    %p122 = scmp.eq.s32.totalorder %s16, 3
    %p123 = por %p121, %p122
    %p124 = scmp.ne.s32.totalorder %s113, %s114
    %p125 = scmp.eq.s32.totalorder %s16, 0
    %p126 = por %p124, %p125
    %p127 = scmp.ne.s32.totalorder %s113, %s114
    %p128 = scmp.eq.s32.totalorder %s17, 3
    %p129 = por %p127, %p128
    %p131 = scmp.ne.s32.totalorder %s114, %s130
    %p132 = scmp.eq.s32.totalorder %s17, 0
    %p133 = por %p131, %p132
    %s134 = ssub.s32 %s18, %s30
    %s135 = ssub.s32 %s19, %s26
    %s136 = sor.u32 %s134, %s135
    %p137 = scmp.eq.s32.totalorder %s136, 0
    %s139 = sadd.s32 %s138, 1
    %s140 = scalar_select %p137, %s138, %s139
    %p143 = pneg %p137
    %p144 = scmp.eq.s32.totalorder %s11, 3
    %p145 = por %p143, %p144
    %p146 = scmp.ne.s32.totalorder %s138, %s141
    %p147 = scmp.eq.s32.totalorder %s11, 0
    %p148 = por %p146, %p147
    %p149 = scmp.ne.s32.totalorder %s138, %s141
    %p150 = scmp.eq.s32.totalorder %s16, 3
    %p151 = por %p149, %p150
    %p152 = scmp.ne.s32.totalorder %s141, %s142
    %p153 = scmp.eq.s32.totalorder %s16, 0
    %p154 = por %p152, %p153
    %p155 = scmp.ne.s32.totalorder %s141, %s142
    %p156 = scmp.eq.s32.totalorder %s17, 3
    %p157 = por %p155, %p156
    %p159 = scmp.ne.s32.totalorder %s142, %s158
    %p160 = scmp.eq.s32.totalorder %s17, 0
    %p161 = por %p159, %p160
    %p162 = scmp.le.s32.totalorder 1, %s11
    %p163 = scmp.lt.s32.totalorder %s11, 5
    %p164 = pnand %p162, %p163
    %p165 = pneg %p164
    // Predicated region
    $region9: #{aspp_block_nhwc.2} parent=5 // pred_check
      _
    $region10: #{aspp_block_nhwc.2} parent=5 // pred_check_branch
      %167 = sbr.rel (%p164) target = $region12
    $region11: #{aspp_block_nhwc.2} parent=5 // pred_region
      %s168 = ssub.s32 %s11, 1
      // Predicated region
      $region13: #{aspp_block_nhwc.2} parent=11 // pred_check
        %p169 = pneg %p70
      $region14: #{aspp_block_nhwc.2} parent=11 // pred_check_branch
        %171 = sbr.rel (%p169) target = $region16
      $region15: #{aspp_block_nhwc.2} parent=11 // pred_region
        _
      $region16: #{aspp_block_nhwc.2} parent=11 // pred_fallthru
        _
    $region12: #{aspp_block_nhwc.2} parent=5 // pred_fallthru
      _
    %p172 = scmp.lt.s32.totalorder %s11, 4
    // Predicated region
    $region17: #{aspp_block_nhwc.2} parent=5 // pred_check
      %p173 = pneg %p172
    $region18: #{aspp_block_nhwc.2} parent=5 // pred_check_branch
      %175 = sbr.rel (%p173) target = $region20
    $region19: #{aspp_block_nhwc.2} parent=5 // pred_region
      // Predicated region
      $region21: #{aspp_block_nhwc.2} parent=19 // pred_check
        %p176 = pneg %p43
      $region22: #{aspp_block_nhwc.2} parent=19 // pred_check_branch
        %178 = sbr.rel (%p176) target = $region24
      $region23: #{aspp_block_nhwc.2} parent=19 // pred_region
        %p179 = scmp.lt.s32.totalorder %s18, 1
        %s180 = scalar_select %p179, %s18, 1
        %s181 = smul.addr %s180, 60
        %s182 = smul.addr %s181, 4
        %s183 = scalar_lea.vmem %s0, %s182
      $region24: #{aspp_block_nhwc.2} parent=19 // pred_fallthru
        _
    $region20: #{aspp_block_nhwc.2} parent=5 // pred_fallthru
      _
    %p184 = scmp.le.s32.totalorder 1, %s11
    %p185 = scmp.lt.s32.totalorder %s11, 5
    %p186 = pnand %p184, %p185
    %p187 = pneg %p186
    // Predicated region
    $region25: #{aspp_block_nhwc.2} parent=5 // pred_check
      _
    $region26: #{aspp_block_nhwc.2} parent=5 // pred_check_branch
      %189 = sbr.rel (%p186) target = $region28
    $region27: #{aspp_block_nhwc.2} parent=5 // pred_region
      %s190 = ssub.s32 %s11, 1
      %p191 = scmp.lt.s32.totalorder %s20, 1
      %s192 = scalar_select %p191, %s20, 1
      %s193 = smul.addr %s192, 60
      %s194 = smul.addr %s193, 4
      %s195 = scalar_lea.vmem %s0, %s194
      %p196 = pneg %p49
      %p197 = pneg %p46
      %p198 = pneg %p70
      %p199 = pneg %p67
      %p200 = pneg %p98
      %p201 = pneg %p95
      %p202 = scmp.lt.s32.totalorder %s20, 1
      %s203 = scalar_select %p202, %s20, 1
      %p204 = scmp.lt.s32.totalorder %s21, 1
      %s205 = scalar_select %p204, %s21, 1
      %s206 = smul.addr %s205, 16
      %s207 = smul.addr %s203, 32
      %s208 = sadd.s32 %s206, %s207
      %s209 = smul.addr %s208, 4
      %s210 = scalar_lea.vmem %s2, %s209
      %p211 = pneg %p126
      %p212 = pneg %p123
      %p213 = scmp.lt.s32.totalorder %s20, 1
      %s214 = scalar_select %p213, %s20, 1
      %p215 = scmp.lt.s32.totalorder %s21, 1
      %s216 = scalar_select %p215, %s21, 1
      %s217 = smul.addr %s214, 2
      %s218 = sadd.s32 %s216, %s217
      %s219 = scalar_lea.vmem %s3, %s218
      %p220 = pneg %p154
      %p221 = pneg %p151
      %p222 = scmp.lt.s32.totalorder %s20, 1
      %s223 = scalar_select %p222, %s20, 1
      %p224 = scmp.lt.s32.totalorder %s21, 1
      %s225 = scalar_select %p224, %s21, 1
      %s226 = smul.addr %s223, 2
      %s227 = sadd.s32 %s225, %s226
      %s228 = scalar_lea.vmem %s4, %s227
      %p229 = scmp.lt.s32.totalorder %s20, 1
      %s230 = scalar_select %p229, %s20, 1
      %s231 = smul.addr %s230, 60
      %s232 = smul.addr %s231, 4
      %s233 = scalar_lea.vmem %s0, %s232
      %p234 = scmp.lt.s32.totalorder %s20, 1
      %s235 = scalar_select %p234, %s20, 1
      %p236 = scmp.lt.s32.totalorder %s21, 1
      %s237 = scalar_select %p236, %s21, 1
      %s238 = smul.addr %s237, 16
      %s239 = smul.addr %s235, 32
      %s240 = sadd.s32 %s238, %s239
      %s241 = smul.addr %s240, 4
      %s242 = scalar_lea.vmem %s2, %s241
      %p243 = scmp.lt.s32.totalorder %s20, 1
      %s244 = scalar_select %p243, %s20, 1
      %p245 = scmp.lt.s32.totalorder %s21, 1
      %s246 = scalar_select %p245, %s21, 1
      %s247 = smul.addr %s244, 2
      %s248 = sadd.s32 %s246, %s247
      %s249 = scalar_lea.vmem %s3, %s248
      %p250 = scmp.lt.s32.totalorder %s20, 1
      %s251 = scalar_select %p250, %s20, 1
      %p252 = scmp.lt.s32.totalorder %s21, 1
      %s253 = scalar_select %p252, %s21, 1
      %s254 = smul.addr %s251, 2
      %s255 = sadd.s32 %s253, %s254
      %s256 = scalar_lea.vmem %s4, %s255
      %s258 = smul.u32 %s21, 8
      %s259 = smul.u32 %s258, 3
      %s260 = smul.addr %s259, 4
      %s261 = scalar_lea.vmem %s233, %s260
      %v262 = vld [vmem:[%s261] sm:$0xf]
      %v263 = vld [vmem:[%s261 + $0x4] sm:$0xf]
      %v264 = vld [vmem:[%s261 + $0x8] sm:$0x3]
      %v265 = vld [vmem:[%s261 + $0xc] sm:$0xf]
      %v266 = vld [vmem:[%s261 + $0x10] sm:$0xf]
      %v267 = vld [vmem:[%s261 + $0x14] sm:$0x3]
      %v268 = vld [vmem:[%s261 + $0x18] sm:$0xf]
      %v269 = vld [vmem:[%s261 + $0x1c] sm:$0xf]
      %v270 = vld [vmem:[%s261 + $0x20] sm:$0x3]
      %v271 = vld [vmem:[%s261 + $0x24] sm:$0xf]
      %v272 = vld [vmem:[%s261 + $0x28] sm:$0xf]
      %v273 = vld [vmem:[%s261 + $0x2c] sm:$0x3]
      %v274 = vld [vmem:[%s261 + $0x30] sm:$0xf]
      %v275 = vld [vmem:[%s261 + $0x34] sm:$0xf]
      %v276 = vld [vmem:[%s261 + $0x38] sm:$0x3]
      %v277 = vld [vmem:[%s261 + $0x3c] sm:$0xf]
      %v278 = vld [vmem:[%s261 + $0x40] sm:$0xf]
      %v279 = vld [vmem:[%s261 + $0x44] sm:$0x3]
      %v280 = vld [vmem:[%s261 + $0x48] sm:$0xf]
      %v281 = vld [vmem:[%s261 + $0x4c] sm:$0xf]
      %v282 = vld [vmem:[%s261 + $0x50] sm:$0x3]
      %v283 = vld [vmem:[%s261 + $0x54] sm:$0xf]
      %v284 = vld [vmem:[%s261 + $0x58] sm:$0xf]
      %v285 = vld [vmem:[%s261 + $0x5c] sm:$0x3]
      %v286 = vld [vmem:[%s261 + $0x60] sm:$0xf]
      %v287 = vld [vmem:[%s261 + $0x64] sm:$0xf]
      %v288 = vld [vmem:[%s261 + $0x68] sm:$0x3]
      %v289 = vld [vmem:[%s261 + $0x6c] sm:$0xf]
      %v290 = vld [vmem:[%s261 + $0x70] sm:$0xf]
      %v291 = vld [vmem:[%s261 + $0x74] sm:$0x3]
      %v292 = vld [vmem:[%s261 + $0x78] sm:$0xf]
      %v293 = vld [vmem:[%s261 + $0x7c] sm:$0xf]
      %v294 = vld [vmem:[%s261 + $0x80] sm:$0x3]
      %v295 = vld [vmem:[%s261 + $0x84] sm:$0xf]
      %v296 = vld [vmem:[%s261 + $0x88] sm:$0xf]
      %v297 = vld [vmem:[%s261 + $0x8c] sm:$0x3]
      %v314 = vunpack.c.l.b16 %v262
      %v315 = vunpack.c.l.b16 %v263
      %v316 = vunpack.c.l.b16 %v265
      %v317 = vunpack.c.l.b16 %v266
      %v318 = vunpack.c.l.b16 %v268
      %v319 = vunpack.c.l.b16 %v269
      %v320 = vunpack.c.l.b16 %v271
      %v321 = vunpack.c.l.b16 %v272
      %v322 = vunpack.c.l.b16 %v274
      %v323 = vunpack.c.l.b16 %v275
      %v324 = vunpack.c.l.b16 %v277
      %v325 = vunpack.c.l.b16 %v278
      %v326 = vunpack.c.l.b16 %v280
      %v327 = vunpack.c.l.b16 %v281
      %v328 = vunpack.c.l.b16 %v283
      %v329 = vunpack.c.l.b16 %v284
      %v330 = vpack.c.b16 %v315, %v314
      %v331 = vpack.c.b16 %v317, %v316
      %v332 = vpack.c.b16 %v319, %v318
      %v333 = vpack.c.b16 %v321, %v320
      %v334 = vpack.c.b16 %v323, %v322
      %v335 = vpack.c.b16 %v325, %v324
      %v336 = vpack.c.b16 %v327, %v326
      %v337 = vpack.c.b16 %v329, %v328
      %v346 = vunpack.c.l.b16 %v264
      %v347 = vunpack.c.l.b16 %v267
      %v348 = vunpack.c.l.b16 %v270
      %v349 = vunpack.c.l.b16 %v273
      %v350 = vunpack.c.l.b16 %v276
      %v351 = vunpack.c.l.b16 %v279
      %v352 = vunpack.c.l.b16 %v282
      %v353 = vunpack.c.l.b16 %v285
      %v354 = vpack.c.b16 %v346, %v346
      %v355 = vpack.c.b16 %v347, %v347
      %v356 = vpack.c.b16 %v348, %v348
      %v357 = vpack.c.b16 %v349, %v349
      %v358 = vpack.c.b16 %v350, %v350
      %v359 = vpack.c.b16 %v351, %v351
      %v360 = vpack.c.b16 %v352, %v352
      %v361 = vpack.c.b16 %v353, %v353
      %vm362 = vcmask 1046528
      %v363 = vrot.slane %v330, 1
      %v364 = vrot.slane %v354, 1
      %v365 = vsel %vm362, %v363, %v364
      %v366 = vrot.slane %v331, 1
      %v367 = vrot.slane %v355, 1
      %v368 = vsel %vm362, %v366, %v367
      %v369 = vrot.slane %v332, 1
      %v370 = vrot.slane %v356, 1
      %v371 = vsel %vm362, %v369, %v370
      %v372 = vrot.slane %v333, 1
      %v373 = vrot.slane %v357, 1
      %v374 = vsel %vm362, %v372, %v373
      %v375 = vrot.slane %v334, 1
      %v376 = vrot.slane %v358, 1
      %v377 = vsel %vm362, %v375, %v376
      %v378 = vrot.slane %v335, 1
      %v379 = vrot.slane %v359, 1
      %v380 = vsel %vm362, %v378, %v379
      %v381 = vrot.slane %v336, 1
      %v382 = vrot.slane %v360, 1
      %v383 = vsel %vm362, %v381, %v382
      %v384 = vrot.slane %v337, 1
      %v385 = vrot.slane %v361, 1
      %v386 = vsel %vm362, %v384, %v385
      %387 = vrot.lane.b32.xlu0 %v365, 4
      %v388 = vpop.permute.xlu0 %387
      %389 = vrot.lane.b32.xlu0 %v368, 4
      %v390 = vpop.permute.xlu0 %389
      %391 = vrot.lane.b32.xlu0 %v371, 4
      %v392 = vpop.permute.xlu0 %391
      %393 = vrot.lane.b32.xlu0 %v374, 4
      %v394 = vpop.permute.xlu0 %393
      %395 = vrot.lane.b32.xlu0 %v377, 4
      %v396 = vpop.permute.xlu0 %395
      %397 = vrot.lane.b32.xlu0 %v380, 4
      %v398 = vpop.permute.xlu0 %397
      %399 = vrot.lane.b32.xlu0 %v383, 4
      %v400 = vpop.permute.xlu0 %399
      %401 = vrot.lane.b32.xlu0 %v386, 4
      %v402 = vpop.permute.xlu0 %401
      %vm403 = vcmask 1045504
      %v404 = vrot.slane %v330, 2
      %v405 = vrot.slane %v354, 2
      %v406 = vsel %vm403, %v404, %v405
      %v407 = vrot.slane %v331, 2
      %v408 = vrot.slane %v355, 2
      %v409 = vsel %vm403, %v407, %v408
      %v410 = vrot.slane %v332, 2
      %v411 = vrot.slane %v356, 2
      %v412 = vsel %vm403, %v410, %v411
      %v413 = vrot.slane %v333, 2
      %v414 = vrot.slane %v357, 2
      %v415 = vsel %vm403, %v413, %v414
      %v416 = vrot.slane %v334, 2
      %v417 = vrot.slane %v358, 2
      %v418 = vsel %vm403, %v416, %v417
      %v419 = vrot.slane %v335, 2
      %v420 = vrot.slane %v359, 2
      %v421 = vsel %vm403, %v419, %v420
      %v422 = vrot.slane %v336, 2
      %v423 = vrot.slane %v360, 2
      %v424 = vsel %vm403, %v422, %v423
      %v425 = vrot.slane %v337, 2
      %v426 = vrot.slane %v361, 2
      %v427 = vsel %vm403, %v425, %v426
      %428 = vrot.lane.b32.xlu0 %v406, 8
      %v429 = vpop.permute.xlu0 %428
      %430 = vrot.lane.b32.xlu0 %v409, 8
      %v431 = vpop.permute.xlu0 %430
      %432 = vrot.lane.b32.xlu0 %v412, 8
      %v433 = vpop.permute.xlu0 %432
      %434 = vrot.lane.b32.xlu0 %v415, 8
      %v435 = vpop.permute.xlu0 %434
      %436 = vrot.lane.b32.xlu0 %v418, 8
      %v437 = vpop.permute.xlu0 %436
      %438 = vrot.lane.b32.xlu0 %v421, 8
      %v439 = vpop.permute.xlu0 %438
      %440 = vrot.lane.b32.xlu0 %v424, 8
      %v441 = vpop.permute.xlu0 %440
      %442 = vrot.lane.b32.xlu0 %v427, 8
      %v443 = vpop.permute.xlu0 %442
      %v448 = vunpack.c.l.b16 %v286
      %v449 = vunpack.c.l.b16 %v287
      %v450 = vunpack.c.l.b16 %v289
      %v451 = vunpack.c.l.b16 %v290
      %v452 = vpack.c.b16 %v449, %v448
      %v453 = vpack.c.b16 %v451, %v450
      %454 = vrot.lane.b32.xlu0 %v332, 12
      %v455 = vpop.permute.xlu0 %454
      %456 = vrot.lane.b32.xlu0 %v333, 12
      %v457 = vpop.permute.xlu0 %456
      %458 = vrot.lane.b32.xlu0 %v334, 12
      %v459 = vpop.permute.xlu0 %458
      %460 = vrot.lane.b32.xlu0 %v335, 12
      %v461 = vpop.permute.xlu0 %460
      %462 = vrot.lane.b32.xlu0 %v336, 12
      %v463 = vpop.permute.xlu0 %462
      %464 = vrot.lane.b32.xlu0 %v337, 12
      %v465 = vpop.permute.xlu0 %464
      %466 = vrot.lane.b32.xlu0 %v452, 12
      %v467 = vpop.permute.xlu0 %466
      %468 = vrot.lane.b32.xlu0 %v453, 12
      %v469 = vpop.permute.xlu0 %468
      %v472 = vunpack.c.l.b16 %v288
      %v473 = vunpack.c.l.b16 %v291
      %v474 = vpack.c.b16 %v472, %v472
      %v475 = vpack.c.b16 %v473, %v473
      %v476 = vrot.slane %v452, 1
      %v477 = vrot.slane %v474, 1
      %v478 = vsel %vm362, %v476, %v477
      %v479 = vrot.slane %v453, 1
      %v480 = vrot.slane %v475, 1
      %v481 = vsel %vm362, %v479, %v480
      %482 = vrot.lane.b32.xlu0 %v371, 16
      %v483 = vpop.permute.xlu0 %482
      %484 = vrot.lane.b32.xlu0 %v374, 16
      %v485 = vpop.permute.xlu0 %484
      %486 = vrot.lane.b32.xlu0 %v377, 16
      %v487 = vpop.permute.xlu0 %486
      %488 = vrot.lane.b32.xlu0 %v380, 16
      %v489 = vpop.permute.xlu0 %488
      %490 = vrot.lane.b32.xlu0 %v383, 16
      %v491 = vpop.permute.xlu0 %490
      %492 = vrot.lane.b32.xlu0 %v386, 16
      %v493 = vpop.permute.xlu0 %492
      %494 = vrot.lane.b32.xlu0 %v478, 16
      %v495 = vpop.permute.xlu0 %494
      %496 = vrot.lane.b32.xlu0 %v481, 16
      %v497 = vpop.permute.xlu0 %496
      %v498 = vrot.slane %v452, 2
      %v499 = vrot.slane %v474, 2
      %v500 = vsel %vm403, %v498, %v499
      %v501 = vrot.slane %v453, 2
      %v502 = vrot.slane %v475, 2
      %v503 = vsel %vm403, %v501, %v502
      %504 = vrot.lane.b32.xlu0 %v412, 20
      %v505 = vpop.permute.xlu0 %504
      %506 = vrot.lane.b32.xlu0 %v415, 20
      %v507 = vpop.permute.xlu0 %506
      %508 = vrot.lane.b32.xlu0 %v418, 20
      %v509 = vpop.permute.xlu0 %508
      %510 = vrot.lane.b32.xlu0 %v421, 20
      %v511 = vpop.permute.xlu0 %510
      %512 = vrot.lane.b32.xlu0 %v424, 20
      %v513 = vpop.permute.xlu0 %512
      %514 = vrot.lane.b32.xlu0 %v427, 20
      %v515 = vpop.permute.xlu0 %514
      %516 = vrot.lane.b32.xlu0 %v500, 20
      %v517 = vpop.permute.xlu0 %516
      %518 = vrot.lane.b32.xlu0 %v503, 20
      %v519 = vpop.permute.xlu0 %518
      %v524 = vunpack.c.l.b16 %v292
      %v525 = vunpack.c.l.b16 %v293
      %v526 = vunpack.c.l.b16 %v295
      %v527 = vunpack.c.l.b16 %v296
      %v528 = vpack.c.b16 %v525, %v524
      %v529 = vpack.c.b16 %v527, %v526
      %530 = vrot.lane.b32.xlu0 %v334, 24
      %v531 = vpop.permute.xlu0 %530
      %532 = vrot.lane.b32.xlu0 %v335, 24
      %v533 = vpop.permute.xlu0 %532
      %534 = vrot.lane.b32.xlu0 %v336, 24
      %v535 = vpop.permute.xlu0 %534
      %536 = vrot.lane.b32.xlu0 %v337, 24
      %v537 = vpop.permute.xlu0 %536
      %538 = vrot.lane.b32.xlu0 %v452, 24
      %v539 = vpop.permute.xlu0 %538
      %540 = vrot.lane.b32.xlu0 %v453, 24
      %v541 = vpop.permute.xlu0 %540
      %542 = vrot.lane.b32.xlu0 %v528, 24
      %v543 = vpop.permute.xlu0 %542
      %544 = vrot.lane.b32.xlu0 %v529, 24
      %v545 = vpop.permute.xlu0 %544
      %v548 = vunpack.c.l.b16 %v294
      %v549 = vunpack.c.l.b16 %v297
      %v550 = vpack.c.b16 %v548, %v548
      %v551 = vpack.c.b16 %v549, %v549
      %v552 = vrot.slane %v528, 1
      %v553 = vrot.slane %v550, 1
      %v554 = vsel %vm362, %v552, %v553
      %v555 = vrot.slane %v529, 1
      %v556 = vrot.slane %v551, 1
      %v557 = vsel %vm362, %v555, %v556
      %558 = vrot.lane.b32.xlu0 %v377, 28
      %v559 = vpop.permute.xlu0 %558
      %560 = vrot.lane.b32.xlu0 %v380, 28
      %v561 = vpop.permute.xlu0 %560
      %562 = vrot.lane.b32.xlu0 %v383, 28
      %v563 = vpop.permute.xlu0 %562
      %564 = vrot.lane.b32.xlu0 %v386, 28
      %v565 = vpop.permute.xlu0 %564
      %566 = vrot.lane.b32.xlu0 %v478, 28
      %v567 = vpop.permute.xlu0 %566
      %568 = vrot.lane.b32.xlu0 %v481, 28
      %v569 = vpop.permute.xlu0 %568
      %570 = vrot.lane.b32.xlu0 %v554, 28
      %v571 = vpop.permute.xlu0 %570
      %572 = vrot.lane.b32.xlu0 %v557, 28
      %v573 = vpop.permute.xlu0 %572
      %v574 = vrot.slane %v528, 2
      %v575 = vrot.slane %v550, 2
      %v576 = vsel %vm403, %v574, %v575
      %v577 = vrot.slane %v529, 2
      %v578 = vrot.slane %v551, 2
      %v579 = vsel %vm403, %v577, %v578
      %580 = vrot.lane.b32.xlu0 %v418, 32
      %v581 = vpop.permute.xlu0 %580
      %582 = vrot.lane.b32.xlu0 %v421, 32
      %v583 = vpop.permute.xlu0 %582
      %584 = vrot.lane.b32.xlu0 %v424, 32
      %v585 = vpop.permute.xlu0 %584
      %586 = vrot.lane.b32.xlu0 %v427, 32
      %v587 = vpop.permute.xlu0 %586
      %588 = vrot.lane.b32.xlu0 %v500, 32
      %v589 = vpop.permute.xlu0 %588
      %590 = vrot.lane.b32.xlu0 %v503, 32
      %v591 = vpop.permute.xlu0 %590
      %592 = vrot.lane.b32.xlu0 %v576, 32
      %v593 = vpop.permute.xlu0 %592
      %594 = vrot.lane.b32.xlu0 %v579, 32
      %v595 = vpop.permute.xlu0 %594
      %vm596 = vcmask 31744
      %v599 = vsel %vm596, %v330, %v388
      %v602 = vsel %vm596, %v331, %v390
      %v605 = vsel %vm596, %v332, %v392
      %v608 = vsel %vm596, %v333, %v394
      %v611 = vsel %vm596, %v334, %v396
      %v614 = vsel %vm596, %v335, %v398
      %v617 = vsel %vm596, %v336, %v400
      %v620 = vsel %vm596, %v337, %v402
      %vm621 = vcmask 64512
      %v623 = vsel %vm621, %v599, %v429
      %v625 = vsel %vm621, %v602, %v431
      %v627 = vsel %vm621, %v605, %v433
      %v629 = vsel %vm621, %v608, %v435
      %v631 = vsel %vm621, %v611, %v437
      %v633 = vsel %vm621, %v614, %v439
      %v635 = vsel %vm621, %v617, %v441
      %v637 = vsel %vm621, %v620, %v443
      %vm638 = vcmask 97280
      %v640 = vsel %vm638, %v623, %v455
      %v642 = vsel %vm638, %v625, %v457
      %v644 = vsel %vm638, %v627, %v459
      %v646 = vsel %vm638, %v629, %v461
      %v648 = vsel %vm638, %v631, %v463
      %v650 = vsel %vm638, %v633, %v465
      %v652 = vsel %vm638, %v635, %v467
      %v654 = vsel %vm638, %v637, %v469
      %vm655 = vcmask 130048
      %v657 = vsel %vm655, %v640, %v483
      %v659 = vsel %vm655, %v642, %v485
      %v661 = vsel %vm655, %v644, %v487
      %v663 = vsel %vm655, %v646, %v489
      %v665 = vsel %vm655, %v648, %v491
      %v667 = vsel %vm655, %v650, %v493
      %v669 = vsel %vm655, %v652, %v495
      %v671 = vsel %vm655, %v654, %v497
      %vm672 = vcmask 162816
      %v674 = vsel %vm672, %v657, %v505
      %v676 = vsel %vm672, %v659, %v507
      %v678 = vsel %vm672, %v661, %v509
      %v680 = vsel %vm672, %v663, %v511
      %v682 = vsel %vm672, %v665, %v513
      %v684 = vsel %vm672, %v667, %v515
      %v686 = vsel %vm672, %v669, %v517
      %v688 = vsel %vm672, %v671, %v519
      %vm689 = vcmask 195584
      %v691 = vsel %vm689, %v674, %v531
      %v693 = vsel %vm689, %v676, %v533
      %v695 = vsel %vm689, %v678, %v535
      %v697 = vsel %vm689, %v680, %v537
      %v699 = vsel %vm689, %v682, %v539
      %v701 = vsel %vm689, %v684, %v541
      %v703 = vsel %vm689, %v686, %v543
      %v705 = vsel %vm689, %v688, %v545
      %vm706 = vcmask 228352
      %v708 = vsel %vm706, %v691, %v559
      %v710 = vsel %vm706, %v693, %v561
      %v712 = vsel %vm706, %v695, %v563
      %v714 = vsel %vm706, %v697, %v565
      %v716 = vsel %vm706, %v699, %v567
      %v718 = vsel %vm706, %v701, %v569
      %v720 = vsel %vm706, %v703, %v571
      %v722 = vsel %vm706, %v705, %v573
      %vm723 = vcmask 261120
      %v725 = vsel %vm723, %v708, %v581
      %v727 = vsel %vm723, %v710, %v583
      %v729 = vsel %vm723, %v712, %v585
      %v731 = vsel %vm723, %v714, %v587
      %v733 = vsel %vm723, %v716, %v589
      %v735 = vsel %vm723, %v718, %v591
      %v737 = vsel %vm723, %v720, %v593
      %v739 = vsel %vm723, %v722, %v595
      %v740 = vld [vmem:[%s1] sm:$0xf]
      %v741 = vld [vmem:[%s1 + $0x4] sm:$0xf]
      %v742 = vld [vmem:[%s1 + $0x8] sm:$0xf]
      %v743 = vld [vmem:[%s1 + $0xc] sm:$0xf]
      %v744 = vld [vmem:[%s1 + $0x10] sm:$0x3]
      %v750 = vunpack.c.l.b16 %v740
      %v751 = vunpack.c.l.b16 %v741
      %v752 = vunpack.c.l.b16 %v742
      %v753 = vunpack.c.l.b16 %v743
      %v754 = vunpack.c.l.b16 %v744
      %v755 = vpack.c.b16 %v751, %v750
      %v756 = vpack.c.b16 %v753, %v752
      %v757 = vpack.c.b16 %v754, %v754
      %vm760 = vcmask 293888
      %v761 = vsel %vm760, %v725, 0
      %v763 = vsel %vm760, %v727, 0
      %v765 = vsel %vm760, %v729, 0
      %v767 = vsel %vm760, %v731, 0
      %v769 = vsel %vm760, %v733, 0
      %v771 = vsel %vm760, %v735, 0
      %v773 = vsel %vm760, %v737, 0
      %v775 = vsel %vm760, %v739, 0
      %vm777 = vcmask 1041408
      %v779 = vsel %vm777, %v757, 0
      %781 = vmatprep.subr.bf16.mxu0 0
      %782 = vmatpush1.bf16.msra.mxu0 0
      %783 = vmatprep.subr.bf16.mxu0 0
      %784 = vmatpush1.bf16.msra.mxu0 0
      %785 = vmatprep.subr.bf16.mxu0 0
      %786 = vmatpush1.bf16.msra.mxu0 0
      %787 = vmatprep.subr.bf16.mxu0 0
      %788 = vmatpush1.bf16.msra.mxu0 0
      %789 = vmatprep.subr.bf16.mxu0 0
      %790 = vmatpush1.bf16.msra.mxu0 0
      %791 = vmatprep.subr.bf16.mxu0 0
      %792 = vmatpush1.bf16.msra.mxu0 %v779
      %793 = vmatprep.subr.bf16.mxu0 0
      %794 = vmatpush1.bf16.msra.mxu0 %v756
      %795 = vmatprep.subr.bf16.mxu0 0
      %796 = vmatpush1.bf16.msra.mxu0 %v755
      %797 = vmatprep.subr.bf16.mxu0 0
      %798 = vmatpush2.bf16.msra.mxu0 0
      %799 = vmatprep.subr.bf16.mxu0 0
      %800 = vmatpush2.bf16.msra.mxu0 0
      %801 = vmatprep.subr.bf16.mxu0 0
      %802 = vmatpush2.bf16.msra.mxu0 0
      %803 = vmatprep.subr.bf16.mxu0 0
      %804 = vmatpush2.bf16.msra.mxu0 0
      %805 = vmatprep.subr.bf16.mxu0 0
      %806 = vmatpush2.bf16.msra.mxu0 0
      %807 = vmatprep.subr.bf16.mxu0 0
      %808 = vmatpush2.bf16.msra.mxu0 0
      %809 = vmatprep.subr.bf16.mxu0 0
      %810 = vmatpush2.bf16.msra.mxu0 0
      %811 = vmatprep.subr.bf16.mxu0 0
      %812 = vmatpush2.bf16.msra.mxu0 0
      %813 = vmatprep.mubr.bf16.mxu0 0
      %814 = vmatmul.mubr.bf16.gmra.mxu0 %v761
      %v815 = vpop.f32.mrf.mxu0
      %v816 = vadd.f32 0.0, %v815
      %v817 = vpop.f32.mrf.mxu0
      %v818 = vpop.f32.mrf.mxu0
      %v819 = vadd.f32 0.0, %v818
      %v820 = vpop.f32.mrf.mxu0
      %821 = vmatprep.mubr.bf16.mxu0 0
      %822 = vmatmul.mubr.bf16.gmra.mxu0 %v763
      %v823 = vpop.f32.mrf.mxu0
      %v824 = vadd.f32 0.0, %v823
      %v825 = vpop.f32.mrf.mxu0
      %v826 = vpop.f32.mrf.mxu0
      %v827 = vadd.f32 0.0, %v826
      %v828 = vpop.f32.mrf.mxu0
      %829 = vmatprep.mubr.bf16.mxu0 0
      %830 = vmatmul.mubr.bf16.gmra.mxu0 %v765
      %v831 = vpop.f32.mrf.mxu0
      %v832 = vadd.f32 0.0, %v831
      %v833 = vpop.f32.mrf.mxu0
      %v834 = vpop.f32.mrf.mxu0
      %v835 = vadd.f32 0.0, %v834
      %v836 = vpop.f32.mrf.mxu0
      %837 = vmatprep.mubr.bf16.mxu0 0
      %838 = vmatmul.mubr.bf16.gmra.mxu0 %v767
      %v839 = vpop.f32.mrf.mxu0
      %v840 = vadd.f32 0.0, %v839
      %v841 = vpop.f32.mrf.mxu0
      %v842 = vpop.f32.mrf.mxu0
      %v843 = vadd.f32 0.0, %v842
      %v844 = vpop.f32.mrf.mxu0
      %845 = vmatprep.mubr.bf16.mxu0 0
      %846 = vmatmul.mubr.bf16.gmra.mxu0 %v769
      %v847 = vpop.f32.mrf.mxu0
      %v848 = vadd.f32 0.0, %v847
      %v849 = vpop.f32.mrf.mxu0
      %v850 = vpop.f32.mrf.mxu0
      %v851 = vadd.f32 0.0, %v850
      %v852 = vpop.f32.mrf.mxu0
      %853 = vmatprep.mubr.bf16.mxu0 0
      %854 = vmatmul.mubr.bf16.gmra.mxu0 %v771
      %v855 = vpop.f32.mrf.mxu0
      %v856 = vadd.f32 0.0, %v855
      %v857 = vpop.f32.mrf.mxu0
      %v858 = vpop.f32.mrf.mxu0
      %v859 = vadd.f32 0.0, %v858
      %v860 = vpop.f32.mrf.mxu0
      %861 = vmatprep.mubr.bf16.mxu0 0
      %862 = vmatmul.mubr.bf16.gmra.mxu0 %v773
      %v863 = vpop.f32.mrf.mxu0
      %v864 = vadd.f32 0.0, %v863
      %v865 = vpop.f32.mrf.mxu0
      %v866 = vpop.f32.mrf.mxu0
      %v867 = vadd.f32 0.0, %v866
      %v868 = vpop.f32.mrf.mxu0
      %869 = vmatprep.mubr.bf16.mxu0 0
      %870 = vmatmul.mubr.bf16.gmra.mxu0 %v775
      %v871 = vpop.f32.mrf.mxu0
      %v872 = vadd.f32 0.0, %v871
      %v873 = vpop.f32.mrf.mxu0
      %v874 = vpop.f32.mrf.mxu0
      %v875 = vadd.f32 0.0, %v874
      %v876 = vpop.f32.mrf.mxu0
      %877 = vdwg.mxu0
      %878 = vst.msk [vmem:[#allocation2] sm:$0xff] %vm621, %v816
      %879 = vst.msk [vmem:[#allocation2 + $0x8] sm:$0xff] %vm621, %v819
      %880 = vst.msk [vmem:[#allocation2 + $0x10] sm:$0xff] %vm621, %v824
      %881 = vst.msk [vmem:[#allocation2 + $0x18] sm:$0xff] %vm621, %v827
      %882 = vst.msk [vmem:[#allocation2 + $0x20] sm:$0xff] %vm621, %v832
      %883 = vst.msk [vmem:[#allocation2 + $0x28] sm:$0xff] %vm621, %v835
      %884 = vst.msk [vmem:[#allocation2 + $0x30] sm:$0xff] %vm621, %v840
      %885 = vst.msk [vmem:[#allocation2 + $0x38] sm:$0xff] %vm621, %v843
      %886 = vst.msk [vmem:[#allocation2 + $0x40] sm:$0xff] %vm621, %v848
      %887 = vst.msk [vmem:[#allocation2 + $0x48] sm:$0xff] %vm621, %v851
      %888 = vst.msk [vmem:[#allocation2 + $0x50] sm:$0xff] %vm621, %v856
      %889 = vst.msk [vmem:[#allocation2 + $0x58] sm:$0xff] %vm621, %v859
      %890 = vst.msk [vmem:[#allocation2 + $0x60] sm:$0xff] %vm621, %v864
      %891 = vst.msk [vmem:[#allocation2 + $0x68] sm:$0xff] %vm621, %v867
      %892 = vst.msk [vmem:[#allocation2 + $0x70] sm:$0xff] %vm621, %v872
      %893 = vst.msk [vmem:[#allocation2 + $0x78] sm:$0xff] %vm621, %v875
      %v894 = vld [vmem:[#allocation2] sm:$0xff]
      %v895 = vld [vmem:[#allocation2 + $0x8] sm:$0xff]
      %v896 = vld [vmem:[#allocation2 + $0x10] sm:$0xff]
      %v897 = vld [vmem:[#allocation2 + $0x18] sm:$0xff]
      %v898 = vld [vmem:[#allocation2 + $0x20] sm:$0xff]
      %v899 = vld [vmem:[#allocation2 + $0x28] sm:$0xff]
      %v900 = vld [vmem:[#allocation2 + $0x30] sm:$0xff]
      %v901 = vld [vmem:[#allocation2 + $0x38] sm:$0xff]
      %v902 = vld [vmem:[#allocation2 + $0x40] sm:$0xff]
      %v903 = vld [vmem:[#allocation2 + $0x48] sm:$0xff]
      %v904 = vld [vmem:[#allocation2 + $0x50] sm:$0xff]
      %v905 = vld [vmem:[#allocation2 + $0x58] sm:$0xff]
      %v906 = vld [vmem:[#allocation2 + $0x60] sm:$0xff]
      %v907 = vld [vmem:[#allocation2 + $0x68] sm:$0xff]
      %v908 = vld [vmem:[#allocation2 + $0x70] sm:$0xff]
      %v909 = vld [vmem:[#allocation2 + $0x78] sm:$0xff]
      %v910 = vpack.c.bf16 %v895, %v894
      %v911 = vpack.c.bf16 %v897, %v896
      %v912 = vpack.c.bf16 %v899, %v898
      %v913 = vpack.c.bf16 %v901, %v900
      %v914 = vpack.c.bf16 %v903, %v902
      %v915 = vpack.c.bf16 %v905, %v904
      %v916 = vpack.c.bf16 %v907, %v906
      %v917 = vpack.c.bf16 %v909, %v908
      %v926 = vunpack.c.l.b16 %v910
      %v927 = vunpack.c.h.b16 %v910
      %v928 = vunpack.c.l.b16 %v911
      %v929 = vunpack.c.h.b16 %v911
      %v930 = vunpack.c.l.b16 %v912
      %v931 = vunpack.c.h.b16 %v912
      %v932 = vunpack.c.l.b16 %v913
      %v933 = vunpack.c.h.b16 %v913
      %v934 = vunpack.c.l.b16 %v914
      %v935 = vunpack.c.h.b16 %v914
      %v936 = vunpack.c.l.b16 %v915
      %v937 = vunpack.c.h.b16 %v915
      %v938 = vunpack.c.l.b16 %v916
      %v939 = vunpack.c.h.b16 %v916
      %v940 = vunpack.c.l.b16 %v917
      %v941 = vunpack.c.h.b16 %v917
      %v942 = vpack.c.b16 %v926, %v926
      %v943 = vpack.c.b16 %v927, %v927
      %v944 = vpack.c.b16 %v928, %v928
      %v945 = vpack.c.b16 %v929, %v929
      %v946 = vpack.c.b16 %v930, %v930
      %v947 = vpack.c.b16 %v931, %v931
      %v948 = vpack.c.b16 %v932, %v932
      %v949 = vpack.c.b16 %v933, %v933
      %v950 = vpack.c.b16 %v934, %v934
      %v951 = vpack.c.b16 %v935, %v935
      %v952 = vpack.c.b16 %v936, %v936
      %v953 = vpack.c.b16 %v937, %v937
      %v954 = vpack.c.b16 %v938, %v938
      %v955 = vpack.c.b16 %v939, %v939
      %v956 = vpack.c.b16 %v940, %v940
      %v957 = vpack.c.b16 %v941, %v941
      %vm974 = vcmask 60416
      %975 = vst.msk [vmem:[%s242] sm:$0xf] %vm974, %v942
      %976 = vst.msk [vmem:[%s242 + $0x4] sm:$0xf] %vm974, %v943
      %977 = vst.msk [vmem:[%s242 + $0x8] sm:$0xf] %vm974, %v944
      %978 = vst.msk [vmem:[%s242 + $0xc] sm:$0xf] %vm974, %v945
      %979 = vst.msk [vmem:[%s242 + $0x10] sm:$0xf] %vm974, %v946
      %980 = vst.msk [vmem:[%s242 + $0x14] sm:$0xf] %vm974, %v947
      %981 = vst.msk [vmem:[%s242 + $0x18] sm:$0xf] %vm974, %v948
      %982 = vst.msk [vmem:[%s242 + $0x1c] sm:$0xf] %vm974, %v949
      %983 = vst.msk [vmem:[%s242 + $0x20] sm:$0xf] %vm974, %v950
      %984 = vst.msk [vmem:[%s242 + $0x24] sm:$0xf] %vm974, %v951
      %985 = vst.msk [vmem:[%s242 + $0x28] sm:$0xf] %vm974, %v952
      %986 = vst.msk [vmem:[%s242 + $0x2c] sm:$0xf] %vm974, %v953
      %987 = vst.msk [vmem:[%s242 + $0x30] sm:$0xf] %vm974, %v954
      %988 = vst.msk [vmem:[%s242 + $0x34] sm:$0xf] %vm974, %v955
      %989 = vst.msk [vmem:[%s242 + $0x38] sm:$0xf] %vm974, %v956
      %990 = vst.msk [vmem:[%s242 + $0x3c] sm:$0xf] %vm974, %v957
      %v991 = vsel %vm621, %v894, 0.0
      %v992 = vsel %vm621, %v895, 0.0
      %v993 = vadd.f32 %v991, %v992
      %v994 = vsel %vm621, %v896, 0.0
      %v995 = vadd.f32 %v993, %v994
      %v996 = vsel %vm621, %v897, 0.0
      %v997 = vadd.f32 %v995, %v996
      %v998 = vsel %vm621, %v898, 0.0
      %v999 = vadd.f32 %v997, %v998
      %v1000 = vsel %vm621, %v899, 0.0
      %v1001 = vadd.f32 %v999, %v1000
      %v1002 = vsel %vm621, %v900, 0.0
      %v1003 = vadd.f32 %v1001, %v1002
      %v1004 = vsel %vm621, %v901, 0.0
      %v1005 = vadd.f32 %v1003, %v1004
      %v1006 = vsel %vm621, %v902, 0.0
      %v1007 = vadd.f32 %v1005, %v1006
      %v1008 = vsel %vm621, %v903, 0.0
      %v1009 = vadd.f32 %v1007, %v1008
      %v1010 = vsel %vm621, %v904, 0.0
      %v1011 = vadd.f32 %v1009, %v1010
      %v1012 = vsel %vm621, %v905, 0.0
      %v1013 = vadd.f32 %v1011, %v1012
      %v1014 = vsel %vm621, %v906, 0.0
      %v1015 = vadd.f32 %v1013, %v1014
      %v1016 = vsel %vm621, %v907, 0.0
      %v1017 = vadd.f32 %v1015, %v1016
      %v1018 = vsel %vm621, %v908, 0.0
      %v1019 = vadd.f32 %v1017, %v1018
      %v1020 = vsel %vm621, %v909, 0.0
      %v1021 = vadd.f32 %v1019, %v1020
      %v1022 = vrot.slane %v1021, 4
      %v1023 = vadd.f32 %v1021, %v1022
      %v1024 = vrot.slane %v1023, 2
      %v1025 = vadd.f32 %v1023, %v1024
      %v1026 = vrot.slane %v1025, 1
      %v1027 = vadd.f32 %v1025, %v1026
      %vm1028 = vcmask 57344
      %1029 = vst.msk [vmem:[%s249] sm:$0x1] %vm1028, %v1027
      %v1030 = vmul.f32 %v894, %v894
      %v1031 = vmul.f32 %v895, %v895
      %v1032 = vmul.f32 %v896, %v896
      %v1033 = vmul.f32 %v897, %v897
      %v1034 = vmul.f32 %v898, %v898
      %v1035 = vmul.f32 %v899, %v899
      %v1036 = vmul.f32 %v900, %v900
      %v1037 = vmul.f32 %v901, %v901
      %v1038 = vmul.f32 %v902, %v902
      %v1039 = vmul.f32 %v903, %v903
      %v1040 = vmul.f32 %v904, %v904
      %v1041 = vmul.f32 %v905, %v905
      %v1042 = vmul.f32 %v906, %v906
      %v1043 = vmul.f32 %v907, %v907
      %v1044 = vmul.f32 %v908, %v908
      %v1045 = vmul.f32 %v909, %v909
      %v1046 = vsel %vm621, %v1030, 0.0
      %v1047 = vsel %vm621, %v1031, 0.0
      %v1048 = vadd.f32 %v1046, %v1047
      %v1049 = vsel %vm621, %v1032, 0.0
      %v1050 = vadd.f32 %v1048, %v1049
      %v1051 = vsel %vm621, %v1033, 0.0
      %v1052 = vadd.f32 %v1050, %v1051
      %v1053 = vsel %vm621, %v1034, 0.0
      %v1054 = vadd.f32 %v1052, %v1053
      %v1055 = vsel %vm621, %v1035, 0.0
      %v1056 = vadd.f32 %v1054, %v1055
      %v1057 = vsel %vm621, %v1036, 0.0
      %v1058 = vadd.f32 %v1056, %v1057
      %v1059 = vsel %vm621, %v1037, 0.0
      %v1060 = vadd.f32 %v1058, %v1059
      %v1061 = vsel %vm621, %v1038, 0.0
      %v1062 = vadd.f32 %v1060, %v1061
      %v1063 = vsel %vm621, %v1039, 0.0
      %v1064 = vadd.f32 %v1062, %v1063
      %v1065 = vsel %vm621, %v1040, 0.0
      %v1066 = vadd.f32 %v1064, %v1065
      %v1067 = vsel %vm621, %v1041, 0.0
      %v1068 = vadd.f32 %v1066, %v1067
      %v1069 = vsel %vm621, %v1042, 0.0
      %v1070 = vadd.f32 %v1068, %v1069
      %v1071 = vsel %vm621, %v1043, 0.0
      %v1072 = vadd.f32 %v1070, %v1071
      %v1073 = vsel %vm621, %v1044, 0.0
      %v1074 = vadd.f32 %v1072, %v1073
      %v1075 = vsel %vm621, %v1045, 0.0
      %v1076 = vadd.f32 %v1074, %v1075
      %v1077 = vrot.slane %v1076, 4
      %v1078 = vadd.f32 %v1076, %v1077
      %v1079 = vrot.slane %v1078, 2
      %v1080 = vadd.f32 %v1078, %v1079
      %v1081 = vrot.slane %v1080, 1
      %v1082 = vadd.f32 %v1080, %v1081
      %1083 = vst.msk [vmem:[%s256] sm:$0x1] %vm1028, %v1082
      %p1084 = scmp.lt.s32.totalorder %s20, 1
      %s1085 = scalar_select %p1084, %s20, 1
      %p1086 = scmp.lt.s32.totalorder %s21, 1
      %s1087 = scalar_select %p1086, %s21, 1
      %s1088 = smul.addr %s1087, 16
      %s1089 = smul.addr %s1085, 32
      %s1090 = sadd.s32 %s1088, %s1089
      %s1091 = smul.addr %s1090, 4
      %s1092 = scalar_lea.vmem %s2, %s1091
      %p1093 = scmp.lt.s32.totalorder %s20, 1
      %s1094 = scalar_select %p1093, %s20, 1
      %p1095 = scmp.lt.s32.totalorder %s21, 1
      %s1096 = scalar_select %p1095, %s21, 1
      %s1097 = smul.addr %s1094, 2
      %s1098 = sadd.s32 %s1096, %s1097
      %s1099 = scalar_lea.vmem %s3, %s1098
      %p1100 = scmp.lt.s32.totalorder %s20, 1
      %s1101 = scalar_select %p1100, %s20, 1
      %p1102 = scmp.lt.s32.totalorder %s21, 1
      %s1103 = scalar_select %p1102, %s21, 1
      %s1104 = smul.addr %s1101, 2
      %s1105 = sadd.s32 %s1103, %s1104
      %s1106 = scalar_lea.vmem %s4, %s1105
      // Predicated region
      $region29: #{aspp_block_nhwc.2} parent=27 // pred_check
        %p1107 = pneg %p95
      $region30: #{aspp_block_nhwc.2} parent=27 // pred_check_branch
        %1109 = sbr.rel (%p1107) target = $region32
      $region31: #{aspp_block_nhwc.2} parent=27 // pred_region
        _
      $region32: #{aspp_block_nhwc.2} parent=27 // pred_fallthru
        _
      // Predicated region
      $region33: #{aspp_block_nhwc.2} parent=27 // pred_check
        %p1110 = pneg %p123
      $region34: #{aspp_block_nhwc.2} parent=27 // pred_check_branch
        %1112 = sbr.rel (%p1110) target = $region36
      $region35: #{aspp_block_nhwc.2} parent=27 // pred_region
        _
      $region36: #{aspp_block_nhwc.2} parent=27 // pred_fallthru
        _
      // Predicated region
      $region37: #{aspp_block_nhwc.2} parent=27 // pred_check
        %p1113 = pneg %p151
      $region38: #{aspp_block_nhwc.2} parent=27 // pred_check_branch
        %1115 = sbr.rel (%p1113) target = $region40
      $region39: #{aspp_block_nhwc.2} parent=27 // pred_region
        _
      $region40: #{aspp_block_nhwc.2} parent=27 // pred_fallthru
        _
    $region28: #{aspp_block_nhwc.2} parent=5 // pred_fallthru
      _
    %p1116 = scmp.le.s32.totalorder 2, %s11
    // Predicated region
    $region41: #{aspp_block_nhwc.2} parent=5 // pred_check
      %p1117 = pneg %p1116
    $region42: #{aspp_block_nhwc.2} parent=5 // pred_check_branch
      %1119 = sbr.rel (%p1117) target = $region44
    $region43: #{aspp_block_nhwc.2} parent=5 // pred_region
      %s1120 = ssub.s32 %s11, 2
      // Predicated region
      $region45: #{aspp_block_nhwc.2} parent=43 // pred_check
        %p1121 = pneg %p101
      $region46: #{aspp_block_nhwc.2} parent=43 // pred_check_branch
        %1123 = sbr.rel (%p1121) target = $region48
      $region47: #{aspp_block_nhwc.2} parent=43 // pred_region
        %p1124 = scmp.lt.s32.totalorder %s22, 1
        %s1125 = scalar_select %p1124, %s22, 1
        %p1126 = scmp.lt.s32.totalorder %s23, 1
        %s1127 = scalar_select %p1126, %s23, 1
        %s1128 = smul.addr %s1127, 16
        %s1129 = smul.addr %s1125, 32
        %s1130 = sadd.s32 %s1128, %s1129
        %s1131 = smul.addr %s1130, 4
        %s1132 = scalar_lea.vmem %s2, %s1131
      $region48: #{aspp_block_nhwc.2} parent=43 // pred_fallthru
        _
      // Predicated region
      $region49: #{aspp_block_nhwc.2} parent=43 // pred_check
        %p1133 = pneg %p129
      $region50: #{aspp_block_nhwc.2} parent=43 // pred_check_branch
        %1135 = sbr.rel (%p1133) target = $region52
      $region51: #{aspp_block_nhwc.2} parent=43 // pred_region
        %p1136 = scmp.lt.s32.totalorder %s22, 1
        %s1137 = scalar_select %p1136, %s22, 1
        %p1138 = scmp.lt.s32.totalorder %s23, 1
        %s1139 = scalar_select %p1138, %s23, 1
        %s1140 = smul.addr %s1137, 2
        %s1141 = sadd.s32 %s1139, %s1140
        %s1142 = scalar_lea.vmem %s3, %s1141
      $region52: #{aspp_block_nhwc.2} parent=43 // pred_fallthru
        _
      // Predicated region
      $region53: #{aspp_block_nhwc.2} parent=43 // pred_check
        %p1143 = pneg %p157
      $region54: #{aspp_block_nhwc.2} parent=43 // pred_check_branch
        %1145 = sbr.rel (%p1143) target = $region56
      $region55: #{aspp_block_nhwc.2} parent=43 // pred_region
        %p1146 = scmp.lt.s32.totalorder %s22, 1
        %s1147 = scalar_select %p1146, %s22, 1
        %p1148 = scmp.lt.s32.totalorder %s23, 1
        %s1149 = scalar_select %p1148, %s23, 1
        %s1150 = smul.addr %s1147, 2
        %s1151 = sadd.s32 %s1149, %s1150
        %s1152 = scalar_lea.vmem %s4, %s1151
      $region56: #{aspp_block_nhwc.2} parent=43 // pred_fallthru
        _
    $region44: #{aspp_block_nhwc.2} parent=5 // pred_fallthru
      _
  $region6: #{aspp_block_nhwc.2} parent=0 // loop_footer
    %s15 = sadd.s32 1, %s11
  $region7: #{aspp_block_nhwc.2} parent=0 // loop_footer_branch
    %10 = sbr.rel target = $region3
  $region8: #{aspp_block_nhwc.2} parent=0 // loop_exit
    _

</llo_original>
